<compile_context>
chip_gen: v5e
topology: v5e:2x2
jax: 0.10.0
libtpu: 0.0.40
codegen_flags: <defaults>
</compile_context>

<pallas_src>
import jax
import jax.numpy as jnp
from jax.experimental import pallas as pl
from jax.experimental.pallas import tpu as pltpu


def _round_up(x, m):
    return (x + m - 1) // m * m


def _make_conv2d_kernel(bn, oh, ow, cin, cout_p, kh_sz, kw_sz, stride, dilation):
    k_total = kh_sz * kw_sz * cin
    m_blk = bn * oh * ow

    def kernel(xp_ref, w_ref, b_ref, o_ref):
        # xp_ref: (BN, HP, WP, CIN)     padded NHWC input block (VMEM)
        # w_ref : (KH*KW*CIN, COUT_P)   flattened, lane-dense weight
        # b_ref : (1, COUT_P)           fp32 bias (zero-padded)
        # o_ref : (BN*OH*OW, COUT_P)    flat, lane-dense output block
        xp = xp_ref[...]

        # im2col: gather all KH*KW taps into one fat-K patch matrix so the MXU
        # sees a single [M, KH*KW*CIN] @ [KH*KW*CIN, COUT_P] contraction.
        patches = []
        for kh in range(kh_sz):
            for kw in range(kw_sz):
                h0 = kh * dilation
                w0 = kw * dilation
                if stride == 1:
                    patch = jax.lax.slice(
                        xp, (0, h0, w0, 0), (bn, h0 + oh, w0 + ow, cin))
                else:
                    patch = jax.lax.slice(
                        xp, (0, h0, w0, 0),
                        (bn, h0 + (oh - 1) * stride + 1,
                         w0 + (ow - 1) * stride + 1, cin),
                        (1, stride, stride, 1))
                patches.append(patch)                      # (BN, OH, OW, CIN)

        pm = jnp.concatenate(patches, axis=-1)             # (BN, OH, OW, K)
        pm = pm.reshape(m_blk, k_total)                    # single reshape

        acc = jnp.dot(pm, w_ref[...],
                      preferred_element_type=jnp.float32)  # (M, COUT_P) fp32
        acc = acc + b_ref[...]                             # fp32 bias add
        o_ref[...] = acc.astype(o_ref.dtype)

    return kernel


def parameter_conv2d(x, weight, bias=None, *, stride=1, padding=0,
                     dilation=1, groups=1, compute_dtype=None):
    """Equivalent of F.conv2d(x, weight, bias, stride, padding, dilation, groups).

    x:      (N, Cin, H, W)   NCHW (PyTorch layout)
    weight: (Cout, Cin/groups, KH, KW)
    bias:   (Cout,) or None
    compute_dtype: dtype of the matmul operands (accumulation is always fp32).
    Returns: (N, Cout, OH, OW) NCHW.
    """
    n, cin, h, w = x.shape
    cout, cin_w, kh, kw = weight.shape
    assert cin_w * groups == cin, "weight in_channels inconsistent with groups"
    assert cout % groups == 0

    out_dtype = x.dtype
    if compute_dtype is None:
        compute_dtype = x.dtype

    # groups > 1: expand to a block-diagonal (Cout, Cin, KH, KW) weight so the
    # kernel stays a single dense matmul (exact semantics, extra zero FLOPs).
    if groups > 1:
        cin_g = cin // groups
        cout_g = cout // groups
        w_full = jnp.zeros((cout, cin, kh, kw), weight.dtype)
        for g in range(groups):
            w_full = w_full.at[g * cout_g:(g + 1) * cout_g,
                               g * cin_g:(g + 1) * cin_g].set(
                weight[g * cout_g:(g + 1) * cout_g])
        weight = w_full

    oh = (h + 2 * padding - dilation * (kh - 1) - 1) // stride + 1
    ow = (w + 2 * padding - dilation * (kw - 1) - 1) // stride + 1
    hp, wp = h + 2 * padding, w + 2 * padding

    cout_p = _round_up(cout, 128)          # lane-dense output channels
    k_total = kh * kw * cin

    # --- Wrapper glue (XLA fuses transpose + pad + cast into one HBM pass) ---
    x_nhwc = jnp.transpose(x, (0, 2, 3, 1)).astype(compute_dtype)
    x_pad = jnp.pad(
        x_nhwc, ((0, 0), (padding, padding), (padding, padding), (0, 0)))

    # weight OIHW -> HWIO -> (KH*KW*CIN, COUT) -> zero-pad COUT to COUT_P.
    w_flat = jnp.transpose(weight, (2, 3, 1, 0)).reshape(k_total, cout)
    w_flat = jnp.pad(w_flat, ((0, 0), (0, cout_p - cout))).astype(compute_dtype)

    if bias is None:
        bias = jnp.zeros((cout,), jnp.float32)
    b2 = jnp.pad(bias.astype(jnp.float32), (0, cout_p - cout)).reshape(1, cout_p)

    # --- Batch-block size: keep the double-buffered blocks well under VMEM on
    # all generations (v5e scoped default 16 MiB, v7x physical 64 MiB). ---
    op_item = jnp.dtype(compute_dtype).itemsize
    in_bytes = hp * wp * cin * op_item
    patch_bytes = oh * ow * k_total * op_item
    out_bytes = oh * ow * cout_p * jnp.dtype(out_dtype).itemsize
    acc_bytes = oh * ow * cout_p * 4
    per_sample = 2 * (in_bytes + out_bytes) + patch_bytes + acc_bytes
    budget = 8 * 1024 * 1024
    bn = max(1, min(n, budget // max(per_sample, 1)))
    while n % bn:
        bn -= 1
    if bn < n and (bn * oh * ow) % 8 != 0:
        bn = n  # keep the output block sublane-aligned (rare fallback)
    m_blk = bn * oh * ow

    kernel = _make_conv2d_kernel(bn, oh, ow, cin, cout_p, kh, kw,
                                 stride, dilation)

    out_flat = pl.pallas_call(
        kernel,
        out_shape=jax.ShapeDtypeStruct((n * oh * ow, cout_p), out_dtype),
        grid_spec=pltpu.PrefetchScalarGridSpec(
            num_scalar_prefetch=0,
            grid=(n // bn,),
            in_specs=[
                pl.BlockSpec((bn, hp, wp, cin), lambda b: (b, 0, 0, 0)),
                pl.BlockSpec((k_total, cout_p), lambda b: (0, 0)),
                pl.BlockSpec((1, cout_p), lambda b: (0, 0)),
            ],
            out_specs=pl.BlockSpec((m_blk, cout_p), lambda b: (b, 0)),
        ),
        compiler_params=pltpu.CompilerParams(
            dimension_semantics=("parallel",),
            vmem_limit_bytes=32 * 1024 * 1024),
    )(x_pad, w_flat, b2)

    # Slice off the padded channels and go back to NCHW (fused by XLA).
    out_nhwc = out_flat.reshape(n, oh, ow, cout_p)[..., :cout]
    return jnp.transpose(out_nhwc, (0, 3, 1, 2)).astype(out_dtype)


if __name__ == "__main__":
    # Module config: in_channels=4, out_channels=8, kernel_size=3,
    # stride=1, padding=1, dilation=1, groups=1, bias=True.
    N, CIN, H, W = 2, 4, 16, 16
    COUT, KH, KW = 8, 3, 3
    STRIDE, PADDING, DILATION = 1, 1, 1

    key = jax.random.PRNGKey(0)
    kx, kw_, kb = jax.random.split(key, 3)
    x = jax.random.normal(kx, (N, CIN, H, W), jnp.float32)
    weight = jax.random.normal(kw_, (COUT, CIN, KH, KW), jnp.float32) * 0.1
    bias = jax.random.normal(kb, (COUT,), jnp.float32) * 0.1

    out = parameter_conv2d(x, weight, bias, stride=STRIDE, padding=PADDING,
                           dilation=DILATION, groups=1)
    out = jax.block_until_ready(out)

    # Reference check against XLA's conv (same semantics as F.conv2d).
    ref = jax.lax.conv_general_dilated(
        x, weight,
        window_strides=(STRIDE, STRIDE),
        padding=((PADDING, PADDING), (PADDING, PADDING)),
        rhs_dilation=(DILATION, DILATION),
        dimension_numbers=("NCHW", "OIHW", "NCHW"),
    ) + bias.reshape(1, COUT, 1, 1)
    assert out.shape == (N, COUT, H, W)
    assert jnp.allclose(out, ref, atol=1e-4, rtol=1e-4), "mismatch vs reference"

    print("KERNEL_OK")
</pallas_src>

<mosaic_0001>
module attributes {stable_mosaic.version = 11 : i64} {
  func.func @kernel(%arg0: i32, %arg1: memref<2x18x18x4xf32, #tpu.memory_space<vmem>>, %arg2: memref<36x128xf32, #tpu.memory_space<vmem>>, %arg3: memref<1x128xf32, #tpu.memory_space<vmem>>, %arg4: memref<512x128xf32, #tpu.memory_space<vmem>>) attributes {dimension_semantics = [#tpu.dimension_semantics<parallel>], iteration_bounds = array<i64: 1>, scalar_prefetch = 0 : i64, scratch_operands = 0 : i64, tpu.core_type = #tpu.core_type<tc>, window_params = [{transform_indices = @transform_0, window_bounds = array<i64: 2, 18, 18, 4>}, {pipeline_mode = #tpu.pipeline_mode<synchronous>, transform_indices = @transform_1, window_bounds = array<i64: 36, 128>}, {pipeline_mode = #tpu.pipeline_mode<synchronous>, transform_indices = @transform_2, window_bounds = array<i64: 1, 128>}, {transform_indices = @transform_3, window_bounds = array<i64: 512, 128>}]} {
    %c0 = arith.constant 0 : index
    %c0_0 = arith.constant 0 : index
    %c0_1 = arith.constant 0 : index
    %c0_2 = arith.constant 0 : index
    %0 = vector.load %arg1[%c0, %c0_0, %c0_1, %c0_2] : memref<2x18x18x4xf32, #tpu.memory_space<vmem>>, vector<2x18x18x4xf32>
    %1 = vector.extract_strided_slice %0 {offsets = [0, 0, 0, 0], sizes = [2, 16, 16, 4], strides = [1, 1, 1, 1]} : vector<2x18x18x4xf32> to vector<2x16x16x4xf32>
    %2 = vector.extract_strided_slice %0 {offsets = [0, 0, 1, 0], sizes = [2, 16, 16, 4], strides = [1, 1, 1, 1]} : vector<2x18x18x4xf32> to vector<2x16x16x4xf32>
    %3 = vector.extract_strided_slice %0 {offsets = [0, 0, 2, 0], sizes = [2, 16, 16, 4], strides = [1, 1, 1, 1]} : vector<2x18x18x4xf32> to vector<2x16x16x4xf32>
    %4 = vector.extract_strided_slice %0 {offsets = [0, 1, 0, 0], sizes = [2, 16, 16, 4], strides = [1, 1, 1, 1]} : vector<2x18x18x4xf32> to vector<2x16x16x4xf32>
    %5 = vector.extract_strided_slice %0 {offsets = [0, 1, 1, 0], sizes = [2, 16, 16, 4], strides = [1, 1, 1, 1]} : vector<2x18x18x4xf32> to vector<2x16x16x4xf32>
    %6 = vector.extract_strided_slice %0 {offsets = [0, 1, 2, 0], sizes = [2, 16, 16, 4], strides = [1, 1, 1, 1]} : vector<2x18x18x4xf32> to vector<2x16x16x4xf32>
    %7 = vector.extract_strided_slice %0 {offsets = [0, 2, 0, 0], sizes = [2, 16, 16, 4], strides = [1, 1, 1, 1]} : vector<2x18x18x4xf32> to vector<2x16x16x4xf32>
    %8 = vector.extract_strided_slice %0 {offsets = [0, 2, 1, 0], sizes = [2, 16, 16, 4], strides = [1, 1, 1, 1]} : vector<2x18x18x4xf32> to vector<2x16x16x4xf32>
    %9 = vector.extract_strided_slice %0 {offsets = [0, 2, 2, 0], sizes = [2, 16, 16, 4], strides = [1, 1, 1, 1]} : vector<2x18x18x4xf32> to vector<2x16x16x4xf32>
    %10 = tpu.concatenate %1, %2, %3, %4, %5, %6, %7, %8, %9 in 3 : vector<2x16x16x4xf32>, vector<2x16x16x4xf32>, vector<2x16x16x4xf32>, vector<2x16x16x4xf32>, vector<2x16x16x4xf32>, vector<2x16x16x4xf32>, vector<2x16x16x4xf32>, vector<2x16x16x4xf32>, vector<2x16x16x4xf32> -> vector<2x16x16x36xf32>
    %11 = vector.shape_cast %10 : vector<2x16x16x36xf32> to vector<512x36xf32>
    %c0_3 = arith.constant 0 : index
    %c0_4 = arith.constant 0 : index
    %12 = vector.load %arg2[%c0_3, %c0_4] : memref<36x128xf32, #tpu.memory_space<vmem>>, vector<36x128xf32>
    %cst = arith.constant dense<0.000000e+00> : vector<512x128xf32>
    %13 = tpu.matmul %11, %12, %cst {dimension_numbers = #tpu.dot_dimension_numbers<[1], [0], [0], [1], [0, 0, 1, 1], [], []>} : vector<512x36xf32>, vector<36x128xf32>, vector<512x128xf32> -> vector<512x128xf32>
    %c0_5 = arith.constant 0 : index
    %c0_6 = arith.constant 0 : index
    %14 = vector.load %arg3[%c0_5, %c0_6] : memref<1x128xf32, #tpu.memory_space<vmem>>, vector<1x128xf32>
    %15 = vector.broadcast %14 : vector<1x128xf32> to vector<512x128xf32>
    %16 = arith.addf %13, %15 : vector<512x128xf32>
    %c0_7 = arith.constant 0 : index
    %c0_8 = arith.constant 0 : index
    %17 = vector.load %arg4[%c0_7, %c0_8] : memref<512x128xf32, #tpu.memory_space<vmem>>, vector<512x128xf32>
    tpu.vector_store %arg4[%c0_7, %c0_8], %16 {strides = array<i32>} : memref<512x128xf32, #tpu.memory_space<vmem>>, vector<512x128xf32>,
    return
  }
  func.func @transform_0(%arg0: i32) -> (i32, i32, i32, i32) {
    %c0_i32 = arith.constant 0 : i32
    %c0_i32_0 = arith.constant 0 : i32
    %c0_i32_1 = arith.constant 0 : i32
    %c0_i32_2 = arith.constant 0 : i32
    return %arg0, %c0_i32, %c0_i32_0, %c0_i32_1 : i32, i32, i32, i32
  }
  func.func @transform_1(%arg0: i32) -> (i32, i32) {
    %c0_i32 = arith.constant 0 : i32
    %c0_i32_0 = arith.constant 0 : i32
    %c0_i32_1 = arith.constant 0 : i32
    return %c0_i32, %c0_i32_0 : i32, i32
  }
  func.func @transform_2(%arg0: i32) -> (i32, i32) {
    %c0_i32 = arith.constant 0 : i32
    %c0_i32_0 = arith.constant 0 : i32
    %c0_i32_1 = arith.constant 0 : i32
    return %c0_i32, %c0_i32_0 : i32, i32
  }
  func.func @transform_3(%arg0: i32) -> (i32, i32) {
    %c0_i32 = arith.constant 0 : i32
    %c0_i32_0 = arith.constant 0 : i32
    return %arg0, %c0_i32 : i32, i32
  }
}

</mosaic_0001>

<llo_original>
// kernel: tpu_custom_call.1
$region0: #{tpu_custom_call.1}
  #allocation0 [shape = 'u32[]', space=smem, size = 0x4, offset = 0x4, fixed_abs, tag = 'smem constant byte address 0x4 - core index']
  #allocation1 [shape = 'u32[72,128]{1,0:T(1,128)}', space=vmem, size = 0x9000, scoped, tag = 'internal scratch']
  %s0 = inlined_call_operand.vmem [shape: f32[2,18,18,4], index: 0, kind: input, shape index: {}]
  %s1 = inlined_call_operand.vmem [shape: f32[36,128], index: 1, kind: input, shape index: {}]
  %s2 = inlined_call_operand.vmem [shape: f32[1,128], index: 2, kind: input, shape index: {}]
  %s3 = inlined_call_operand.hbm [shape: f32[512,128], index: 3, kind: output, shape index: {}]
  %s4 = sld [smem:[#allocation0]]
  $region22: #{tpu_custom_call.1} parent=0
    _
  %s6 = ssub.s32 1, %s4
  %s7 = scalar_select 0, %s6, %s4
  $region1: #{tpu_custom_call.1} parent=0
    #allocation2 [shape = 'u8[262144]{0}', space=vmem, size = 0x40000, scoped, tag = 'output window, operand 0, single buffered']
    #allocation3 [shape = 's32[1]{0}', space=sflag, size = 0x4, scoped, tag = 'scoped memory for tpu_custom_call.1']
    %8 = vsyncpa [#allocation3], 0
    // Predicated region
    $region2: #{tpu_custom_call.1} parent=1 // pred_check
      _
    $region3: #{tpu_custom_call.1} parent=1 // pred_check_branch
      %10 = sbr.rel (0) target = $region5
    $region4: #{tpu_custom_call.1} parent=1 // pred_region
      _
    $region5: #{tpu_custom_call.1} parent=1 // pred_fallthru
      _
    // Predicated region
    $region6: #{tpu_custom_call.1} parent=1 // pred_check
      _
    $region7: #{tpu_custom_call.1} parent=1 // pred_check_branch
      %12 = sbr.rel (0) target = $region9
    $region8: #{tpu_custom_call.1} parent=1 // pred_region
      _
    $region9: #{tpu_custom_call.1} parent=1 // pred_fallthru
      _
    // Predicated region
    $region10: #{tpu_custom_call.1} parent=1 // pred_check
      _
    $region11: #{tpu_custom_call.1} parent=1 // pred_check_branch
      %14 = sbr.rel (0) target = $region13
    $region12: #{tpu_custom_call.1} parent=1 // pred_region
      _
    $region13: #{tpu_custom_call.1} parent=1 // pred_fallthru
      _
    %v15 = vld [vmem:[%s0] sm:$0xff]
    %v16 = vld [vmem:[%s0 + $0x8] sm:$0xff]
    %v17 = vld [vmem:[%s0 + $0x10] sm:$0x3]
    %v18 = vld [vmem:[%s0 + $0x18] sm:$0xff]
    %v19 = vld [vmem:[%s0 + $0x20] sm:$0xff]
    %v20 = vld [vmem:[%s0 + $0x28] sm:$0x3]
    %v21 = vld [vmem:[%s0 + $0x30] sm:$0xff]
    %v22 = vld [vmem:[%s0 + $0x38] sm:$0xff]
    %v23 = vld [vmem:[%s0 + $0x40] sm:$0x3]
    %v24 = vld [vmem:[%s0 + $0x48] sm:$0xff]
    %v25 = vld [vmem:[%s0 + $0x50] sm:$0xff]
    %v26 = vld [vmem:[%s0 + $0x58] sm:$0x3]
    %v27 = vld [vmem:[%s0 + $0x60] sm:$0xff]
    %v28 = vld [vmem:[%s0 + $0x68] sm:$0xff]
    %v29 = vld [vmem:[%s0 + $0x70] sm:$0x3]
    %v30 = vld [vmem:[%s0 + $0x78] sm:$0xff]
    %v31 = vld [vmem:[%s0 + $0x80] sm:$0xff]
    %v32 = vld [vmem:[%s0 + $0x88] sm:$0x3]
    %v33 = vld [vmem:[%s0 + $0x90] sm:$0xff]
    %v34 = vld [vmem:[%s0 + $0x98] sm:$0xff]
    %v35 = vld [vmem:[%s0 + $0xa0] sm:$0x3]
    %v36 = vld [vmem:[%s0 + $0xa8] sm:$0xff]
    %v37 = vld [vmem:[%s0 + $0xb0] sm:$0xff]
    %v38 = vld [vmem:[%s0 + $0xb8] sm:$0x3]
    %v39 = vld [vmem:[%s0 + $0xc0] sm:$0xff]
    %v40 = vld [vmem:[%s0 + $0xc8] sm:$0xff]
    %v41 = vld [vmem:[%s0 + $0xd0] sm:$0x3]
    %v42 = vld [vmem:[%s0 + $0xd8] sm:$0xff]
    %v43 = vld [vmem:[%s0 + $0xe0] sm:$0xff]
    %v44 = vld [vmem:[%s0 + $0xe8] sm:$0x3]
    %v45 = vld [vmem:[%s0 + $0xf0] sm:$0xff]
    %v46 = vld [vmem:[%s0 + $0xf8] sm:$0xff]
    %v47 = vld [vmem:[%s0 + $0x100] sm:$0x3]
    %v48 = vld [vmem:[%s0 + $0x108] sm:$0xff]
    %v49 = vld [vmem:[%s0 + $0x110] sm:$0xff]
    %v50 = vld [vmem:[%s0 + $0x118] sm:$0x3]
    %v51 = vld [vmem:[%s0 + $0x120] sm:$0xff]
    %v52 = vld [vmem:[%s0 + $0x128] sm:$0xff]
    %v53 = vld [vmem:[%s0 + $0x130] sm:$0x3]
    %v54 = vld [vmem:[%s0 + $0x138] sm:$0xff]
    %v55 = vld [vmem:[%s0 + $0x140] sm:$0xff]
    %v56 = vld [vmem:[%s0 + $0x148] sm:$0x3]
    %v57 = vld [vmem:[%s0 + $0x150] sm:$0xff]
    %v58 = vld [vmem:[%s0 + $0x158] sm:$0xff]
    %v59 = vld [vmem:[%s0 + $0x160] sm:$0x3]
    %v60 = vld [vmem:[%s0 + $0x168] sm:$0xff]
    %v61 = vld [vmem:[%s0 + $0x170] sm:$0xff]
    %v62 = vld [vmem:[%s0 + $0x178] sm:$0x3]
    %v63 = vld [vmem:[%s0 + $0x180] sm:$0xff]
    %v64 = vld [vmem:[%s0 + $0x188] sm:$0xff]
    %v65 = vld [vmem:[%s0 + $0x190] sm:$0x3]
    %v66 = vld [vmem:[%s0 + $0x198] sm:$0xff]
    %v67 = vld [vmem:[%s0 + $0x1a0] sm:$0xff]
    %v68 = vld [vmem:[%s0 + $0x1a8] sm:$0x3]
    %v69 = vld [vmem:[%s0 + $0x1b0] sm:$0xff]
    %v70 = vld [vmem:[%s0 + $0x1b8] sm:$0xff]
    %v71 = vld [vmem:[%s0 + $0x1c0] sm:$0x3]
    %v72 = vld [vmem:[%s0 + $0x1c8] sm:$0xff]
    %v73 = vld [vmem:[%s0 + $0x1d0] sm:$0xff]
    %v74 = vld [vmem:[%s0 + $0x1d8] sm:$0x3]
    %v75 = vld [vmem:[%s0 + $0x1e0] sm:$0xff]
    %v76 = vld [vmem:[%s0 + $0x1e8] sm:$0xff]
    %v77 = vld [vmem:[%s0 + $0x1f0] sm:$0x3]
    %v78 = vld [vmem:[%s0 + $0x1f8] sm:$0xff]
    %v79 = vld [vmem:[%s0 + $0x200] sm:$0xff]
    %v80 = vld [vmem:[%s0 + $0x208] sm:$0x3]
    %v81 = vld [vmem:[%s0 + $0x210] sm:$0xff]
    %v82 = vld [vmem:[%s0 + $0x218] sm:$0xff]
    %v83 = vld [vmem:[%s0 + $0x220] sm:$0x3]
    %v84 = vld [vmem:[%s0 + $0x228] sm:$0xff]
    %v85 = vld [vmem:[%s0 + $0x230] sm:$0xff]
    %v86 = vld [vmem:[%s0 + $0x238] sm:$0x3]
    %v87 = vld [vmem:[%s0 + $0x240] sm:$0xff]
    %v88 = vld [vmem:[%s0 + $0x248] sm:$0xff]
    %v89 = vld [vmem:[%s0 + $0x250] sm:$0x3]
    %v90 = vld [vmem:[%s0 + $0x258] sm:$0xff]
    %v91 = vld [vmem:[%s0 + $0x260] sm:$0xff]
    %v92 = vld [vmem:[%s0 + $0x268] sm:$0x3]
    %v93 = vld [vmem:[%s0 + $0x270] sm:$0xff]
    %v94 = vld [vmem:[%s0 + $0x278] sm:$0xff]
    %v95 = vld [vmem:[%s0 + $0x280] sm:$0x3]
    %v96 = vld [vmem:[%s0 + $0x288] sm:$0xff]
    %v97 = vld [vmem:[%s0 + $0x290] sm:$0xff]
    %v98 = vld [vmem:[%s0 + $0x298] sm:$0x3]
    %v99 = vld [vmem:[%s0 + $0x2a0] sm:$0xff]
    %v100 = vld [vmem:[%s0 + $0x2a8] sm:$0xff]
    %v101 = vld [vmem:[%s0 + $0x2b0] sm:$0x3]
    %v102 = vld [vmem:[%s0 + $0x2b8] sm:$0xff]
    %v103 = vld [vmem:[%s0 + $0x2c0] sm:$0xff]
    %v104 = vld [vmem:[%s0 + $0x2c8] sm:$0x3]
    %v105 = vld [vmem:[%s0 + $0x2d0] sm:$0xff]
    %v106 = vld [vmem:[%s0 + $0x2d8] sm:$0xff]
    %v107 = vld [vmem:[%s0 + $0x2e0] sm:$0x3]
    %v108 = vld [vmem:[%s0 + $0x2e8] sm:$0xff]
    %v109 = vld [vmem:[%s0 + $0x2f0] sm:$0xff]
    %v110 = vld [vmem:[%s0 + $0x2f8] sm:$0x3]
    %v111 = vld [vmem:[%s0 + $0x300] sm:$0xff]
    %v112 = vld [vmem:[%s0 + $0x308] sm:$0xff]
    %v113 = vld [vmem:[%s0 + $0x310] sm:$0x3]
    %v114 = vld [vmem:[%s0 + $0x318] sm:$0xff]
    %v115 = vld [vmem:[%s0 + $0x320] sm:$0xff]
    %v116 = vld [vmem:[%s0 + $0x328] sm:$0x3]
    %v117 = vld [vmem:[%s0 + $0x330] sm:$0xff]
    %v118 = vld [vmem:[%s0 + $0x338] sm:$0xff]
    %v119 = vld [vmem:[%s0 + $0x340] sm:$0x3]
    %v120 = vld [vmem:[%s0 + $0x348] sm:$0xff]
    %v121 = vld [vmem:[%s0 + $0x350] sm:$0xff]
    %v122 = vld [vmem:[%s0 + $0x358] sm:$0x3]
    %vm219 = vcmask 1046528
    %v220 = vrot.slane %v15, 1
    %v221 = vrot.slane %v16, 1
    %v222 = vsel %vm219, %v220, %v221
    %v223 = vrot.slane %v17, 1
    %v224 = vsel %vm219, %v221, %v223
    %v225 = vrot.slane %v18, 1
    %v226 = vrot.slane %v19, 1
    %v227 = vsel %vm219, %v225, %v226
    %v228 = vrot.slane %v20, 1
    %v229 = vsel %vm219, %v226, %v228
    %v230 = vrot.slane %v21, 1
    %v231 = vrot.slane %v22, 1
    %v232 = vsel %vm219, %v230, %v231
    %v233 = vrot.slane %v23, 1
    %v234 = vsel %vm219, %v231, %v233
    %v235 = vrot.slane %v24, 1
    %v236 = vrot.slane %v25, 1
    %v237 = vsel %vm219, %v235, %v236
    %v238 = vrot.slane %v26, 1
    %v239 = vsel %vm219, %v236, %v238
    %v240 = vrot.slane %v27, 1
    %v241 = vrot.slane %v28, 1
    %v242 = vsel %vm219, %v240, %v241
    %v243 = vrot.slane %v29, 1
    %v244 = vsel %vm219, %v241, %v243
    %v245 = vrot.slane %v30, 1
    %v246 = vrot.slane %v31, 1
    %v247 = vsel %vm219, %v245, %v246
    %v248 = vrot.slane %v32, 1
    %v249 = vsel %vm219, %v246, %v248
    %v250 = vrot.slane %v33, 1
    %v251 = vrot.slane %v34, 1
    %v252 = vsel %vm219, %v250, %v251
    %v253 = vrot.slane %v35, 1
    %v254 = vsel %vm219, %v251, %v253
    %v255 = vrot.slane %v36, 1
    %v256 = vrot.slane %v37, 1
    %v257 = vsel %vm219, %v255, %v256
    %v258 = vrot.slane %v38, 1
    %v259 = vsel %vm219, %v256, %v258
    %v260 = vrot.slane %v39, 1
    %v261 = vrot.slane %v40, 1
    %v262 = vsel %vm219, %v260, %v261
    %v263 = vrot.slane %v41, 1
    %v264 = vsel %vm219, %v261, %v263
    %v265 = vrot.slane %v42, 1
    %v266 = vrot.slane %v43, 1
    %v267 = vsel %vm219, %v265, %v266
    %v268 = vrot.slane %v44, 1
    %v269 = vsel %vm219, %v266, %v268
    %v270 = vrot.slane %v45, 1
    %v271 = vrot.slane %v46, 1
    %v272 = vsel %vm219, %v270, %v271
    %v273 = vrot.slane %v47, 1
    %v274 = vsel %vm219, %v271, %v273
    %v275 = vrot.slane %v48, 1
    %v276 = vrot.slane %v49, 1
    %v277 = vsel %vm219, %v275, %v276
    %v278 = vrot.slane %v50, 1
    %v279 = vsel %vm219, %v276, %v278
    %v280 = vrot.slane %v51, 1
    %v281 = vrot.slane %v52, 1
    %v282 = vsel %vm219, %v280, %v281
    %v283 = vrot.slane %v53, 1
    %v284 = vsel %vm219, %v281, %v283
    %v285 = vrot.slane %v54, 1
    %v286 = vrot.slane %v55, 1
    %v287 = vsel %vm219, %v285, %v286
    %v288 = vrot.slane %v56, 1
    %v289 = vsel %vm219, %v286, %v288
    %v290 = vrot.slane %v57, 1
    %v291 = vrot.slane %v58, 1
    %v292 = vsel %vm219, %v290, %v291
    %v293 = vrot.slane %v59, 1
    %v294 = vsel %vm219, %v291, %v293
    %v295 = vrot.slane %v60, 1
    %v296 = vrot.slane %v61, 1
    %v297 = vsel %vm219, %v295, %v296
    %v298 = vrot.slane %v62, 1
    %v299 = vsel %vm219, %v296, %v298
    %v300 = vrot.slane %v69, 1
    %v301 = vrot.slane %v70, 1
    %v302 = vsel %vm219, %v300, %v301
    %v303 = vrot.slane %v71, 1
    %v304 = vsel %vm219, %v301, %v303
    %v305 = vrot.slane %v72, 1
    %v306 = vrot.slane %v73, 1
    %v307 = vsel %vm219, %v305, %v306
    %v308 = vrot.slane %v74, 1
    %v309 = vsel %vm219, %v306, %v308
    %v310 = vrot.slane %v75, 1
    %v311 = vrot.slane %v76, 1
    %v312 = vsel %vm219, %v310, %v311
    %v313 = vrot.slane %v77, 1
    %v314 = vsel %vm219, %v311, %v313
    %v315 = vrot.slane %v78, 1
    %v316 = vrot.slane %v79, 1
    %v317 = vsel %vm219, %v315, %v316
    %v318 = vrot.slane %v80, 1
    %v319 = vsel %vm219, %v316, %v318
    %v320 = vrot.slane %v81, 1
    %v321 = vrot.slane %v82, 1
    %v322 = vsel %vm219, %v320, %v321
    %v323 = vrot.slane %v83, 1
    %v324 = vsel %vm219, %v321, %v323
    %v325 = vrot.slane %v84, 1
    %v326 = vrot.slane %v85, 1
    %v327 = vsel %vm219, %v325, %v326
    %v328 = vrot.slane %v86, 1
    %v329 = vsel %vm219, %v326, %v328
    %v330 = vrot.slane %v87, 1
    %v331 = vrot.slane %v88, 1
    %v332 = vsel %vm219, %v330, %v331
    %v333 = vrot.slane %v89, 1
    %v334 = vsel %vm219, %v331, %v333
    %v335 = vrot.slane %v90, 1
    %v336 = vrot.slane %v91, 1
    %v337 = vsel %vm219, %v335, %v336
    %v338 = vrot.slane %v92, 1
    %v339 = vsel %vm219, %v336, %v338
    %v340 = vrot.slane %v93, 1
    %v341 = vrot.slane %v94, 1
    %v342 = vsel %vm219, %v340, %v341
    %v343 = vrot.slane %v95, 1
    %v344 = vsel %vm219, %v341, %v343
    %v345 = vrot.slane %v96, 1
    %v346 = vrot.slane %v97, 1
    %v347 = vsel %vm219, %v345, %v346
    %v348 = vrot.slane %v98, 1
    %v349 = vsel %vm219, %v346, %v348
    %v350 = vrot.slane %v99, 1
    %v351 = vrot.slane %v100, 1
    %v352 = vsel %vm219, %v350, %v351
    %v353 = vrot.slane %v101, 1
    %v354 = vsel %vm219, %v351, %v353
    %v355 = vrot.slane %v102, 1
    %v356 = vrot.slane %v103, 1
    %v357 = vsel %vm219, %v355, %v356
    %v358 = vrot.slane %v104, 1
    %v359 = vsel %vm219, %v356, %v358
    %v360 = vrot.slane %v105, 1
    %v361 = vrot.slane %v106, 1
    %v362 = vsel %vm219, %v360, %v361
    %v363 = vrot.slane %v107, 1
    %v364 = vsel %vm219, %v361, %v363
    %v365 = vrot.slane %v108, 1
    %v366 = vrot.slane %v109, 1
    %v367 = vsel %vm219, %v365, %v366
    %v368 = vrot.slane %v110, 1
    %v369 = vsel %vm219, %v366, %v368
    %v370 = vrot.slane %v111, 1
    %v371 = vrot.slane %v112, 1
    %v372 = vsel %vm219, %v370, %v371
    %v373 = vrot.slane %v113, 1
    %v374 = vsel %vm219, %v371, %v373
    %v375 = vrot.slane %v114, 1
    %v376 = vrot.slane %v115, 1
    %v377 = vsel %vm219, %v375, %v376
    %v378 = vrot.slane %v116, 1
    %v379 = vsel %vm219, %v376, %v378
    %380 = vrot.lane.b32.xlu0 %v222, 4
    %v381 = vpop.permute.xlu0 %380
    %382 = vrot.lane.b32.xlu0 %v224, 4
    %v383 = vpop.permute.xlu0 %382
    %384 = vrot.lane.b32.xlu0 %v227, 4
    %v385 = vpop.permute.xlu0 %384
    %386 = vrot.lane.b32.xlu0 %v229, 4
    %v387 = vpop.permute.xlu0 %386
    %388 = vrot.lane.b32.xlu0 %v232, 4
    %v389 = vpop.permute.xlu0 %388
    %390 = vrot.lane.b32.xlu0 %v234, 4
    %v391 = vpop.permute.xlu0 %390
    %392 = vrot.lane.b32.xlu0 %v237, 4
    %v393 = vpop.permute.xlu0 %392
    %394 = vrot.lane.b32.xlu0 %v239, 4
    %v395 = vpop.permute.xlu0 %394
    %396 = vrot.lane.b32.xlu0 %v242, 4
    %v397 = vpop.permute.xlu0 %396
    %398 = vrot.lane.b32.xlu0 %v244, 4
    %v399 = vpop.permute.xlu0 %398
    %400 = vrot.lane.b32.xlu0 %v247, 4
    %v401 = vpop.permute.xlu0 %400
    %402 = vrot.lane.b32.xlu0 %v249, 4
    %v403 = vpop.permute.xlu0 %402
    %404 = vrot.lane.b32.xlu0 %v252, 4
    %v405 = vpop.permute.xlu0 %404
    %406 = vrot.lane.b32.xlu0 %v254, 4
    %v407 = vpop.permute.xlu0 %406
    %408 = vrot.lane.b32.xlu0 %v257, 4
    %v409 = vpop.permute.xlu0 %408
    %410 = vrot.lane.b32.xlu0 %v259, 4
    %v411 = vpop.permute.xlu0 %410
    %412 = vrot.lane.b32.xlu0 %v262, 4
    %v413 = vpop.permute.xlu0 %412
    %414 = vrot.lane.b32.xlu0 %v264, 4
    %v415 = vpop.permute.xlu0 %414
    %416 = vrot.lane.b32.xlu0 %v267, 4
    %v417 = vpop.permute.xlu0 %416
    %418 = vrot.lane.b32.xlu0 %v269, 4
    %v419 = vpop.permute.xlu0 %418
    %420 = vrot.lane.b32.xlu0 %v272, 4
    %v421 = vpop.permute.xlu0 %420
    %422 = vrot.lane.b32.xlu0 %v274, 4
    %v423 = vpop.permute.xlu0 %422
    %424 = vrot.lane.b32.xlu0 %v277, 4
    %v425 = vpop.permute.xlu0 %424
    %426 = vrot.lane.b32.xlu0 %v279, 4
    %v427 = vpop.permute.xlu0 %426
    %428 = vrot.lane.b32.xlu0 %v282, 4
    %v429 = vpop.permute.xlu0 %428
    %430 = vrot.lane.b32.xlu0 %v284, 4
    %v431 = vpop.permute.xlu0 %430
    %432 = vrot.lane.b32.xlu0 %v287, 4
    %v433 = vpop.permute.xlu0 %432
    %434 = vrot.lane.b32.xlu0 %v289, 4
    %v435 = vpop.permute.xlu0 %434
    %436 = vrot.lane.b32.xlu0 %v292, 4
    %v437 = vpop.permute.xlu0 %436
    %438 = vrot.lane.b32.xlu0 %v294, 4
    %v439 = vpop.permute.xlu0 %438
    %440 = vrot.lane.b32.xlu0 %v297, 4
    %v441 = vpop.permute.xlu0 %440
    %442 = vrot.lane.b32.xlu0 %v299, 4
    %v443 = vpop.permute.xlu0 %442
    %444 = vrot.lane.b32.xlu0 %v302, 4
    %v445 = vpop.permute.xlu0 %444
    %446 = vrot.lane.b32.xlu0 %v304, 4
    %v447 = vpop.permute.xlu0 %446
    %448 = vrot.lane.b32.xlu0 %v307, 4
    %v449 = vpop.permute.xlu0 %448
    %450 = vrot.lane.b32.xlu0 %v309, 4
    %v451 = vpop.permute.xlu0 %450
    %452 = vrot.lane.b32.xlu0 %v312, 4
    %v453 = vpop.permute.xlu0 %452
    %454 = vrot.lane.b32.xlu0 %v314, 4
    %v455 = vpop.permute.xlu0 %454
    %456 = vrot.lane.b32.xlu0 %v317, 4
    %v457 = vpop.permute.xlu0 %456
    %458 = vrot.lane.b32.xlu0 %v319, 4
    %v459 = vpop.permute.xlu0 %458
    %460 = vrot.lane.b32.xlu0 %v322, 4
    %v461 = vpop.permute.xlu0 %460
    %462 = vrot.lane.b32.xlu0 %v324, 4
    %v463 = vpop.permute.xlu0 %462
    %464 = vrot.lane.b32.xlu0 %v327, 4
    %v465 = vpop.permute.xlu0 %464
    %466 = vrot.lane.b32.xlu0 %v329, 4
    %v467 = vpop.permute.xlu0 %466
    %468 = vrot.lane.b32.xlu0 %v332, 4
    %v469 = vpop.permute.xlu0 %468
    %470 = vrot.lane.b32.xlu0 %v334, 4
    %v471 = vpop.permute.xlu0 %470
    %472 = vrot.lane.b32.xlu0 %v337, 4
    %v473 = vpop.permute.xlu0 %472
    %474 = vrot.lane.b32.xlu0 %v339, 4
    %v475 = vpop.permute.xlu0 %474
    %476 = vrot.lane.b32.xlu0 %v342, 4
    %v477 = vpop.permute.xlu0 %476
    %478 = vrot.lane.b32.xlu0 %v344, 4
    %v479 = vpop.permute.xlu0 %478
    %480 = vrot.lane.b32.xlu0 %v347, 4
    %v481 = vpop.permute.xlu0 %480
    %482 = vrot.lane.b32.xlu0 %v349, 4
    %v483 = vpop.permute.xlu0 %482
    %484 = vrot.lane.b32.xlu0 %v352, 4
    %v485 = vpop.permute.xlu0 %484
    %486 = vrot.lane.b32.xlu0 %v354, 4
    %v487 = vpop.permute.xlu0 %486
    %488 = vrot.lane.b32.xlu0 %v357, 4
    %v489 = vpop.permute.xlu0 %488
    %490 = vrot.lane.b32.xlu0 %v359, 4
    %v491 = vpop.permute.xlu0 %490
    %492 = vrot.lane.b32.xlu0 %v362, 4
    %v493 = vpop.permute.xlu0 %492
    %494 = vrot.lane.b32.xlu0 %v364, 4
    %v495 = vpop.permute.xlu0 %494
    %496 = vrot.lane.b32.xlu0 %v367, 4
    %v497 = vpop.permute.xlu0 %496
    %498 = vrot.lane.b32.xlu0 %v369, 4
    %v499 = vpop.permute.xlu0 %498
    %500 = vrot.lane.b32.xlu0 %v372, 4
    %v501 = vpop.permute.xlu0 %500
    %502 = vrot.lane.b32.xlu0 %v374, 4
    %v503 = vpop.permute.xlu0 %502
    %504 = vrot.lane.b32.xlu0 %v377, 4
    %v505 = vpop.permute.xlu0 %504
    %506 = vrot.lane.b32.xlu0 %v379, 4
    %v507 = vpop.permute.xlu0 %506
    %vm572 = vcmask 1045504
    %v573 = vrot.slane %v15, 2
    %v574 = vrot.slane %v16, 2
    %v575 = vsel %vm572, %v573, %v574
    %v576 = vrot.slane %v17, 2
    %v577 = vsel %vm572, %v574, %v576
    %v578 = vrot.slane %v18, 2
    %v579 = vrot.slane %v19, 2
    %v580 = vsel %vm572, %v578, %v579
    %v581 = vrot.slane %v20, 2
    %v582 = vsel %vm572, %v579, %v581
    %v583 = vrot.slane %v21, 2
    %v584 = vrot.slane %v22, 2
    %v585 = vsel %vm572, %v583, %v584
    %v586 = vrot.slane %v23, 2
    %v587 = vsel %vm572, %v584, %v586
    %v588 = vrot.slane %v24, 2
    %v589 = vrot.slane %v25, 2
    %v590 = vsel %vm572, %v588, %v589
    %v591 = vrot.slane %v26, 2
    %v592 = vsel %vm572, %v589, %v591
    %v593 = vrot.slane %v27, 2
    %v594 = vrot.slane %v28, 2
    %v595 = vsel %vm572, %v593, %v594
    %v596 = vrot.slane %v29, 2
    %v597 = vsel %vm572, %v594, %v596
    %v598 = vrot.slane %v30, 2
    %v599 = vrot.slane %v31, 2
    %v600 = vsel %vm572, %v598, %v599
    %v601 = vrot.slane %v32, 2
    %v602 = vsel %vm572, %v599, %v601
    %v603 = vrot.slane %v33, 2
    %v604 = vrot.slane %v34, 2
    %v605 = vsel %vm572, %v603, %v604
    %v606 = vrot.slane %v35, 2
    %v607 = vsel %vm572, %v604, %v606
    %v608 = vrot.slane %v36, 2
    %v609 = vrot.slane %v37, 2
    %v610 = vsel %vm572, %v608, %v609
    %v611 = vrot.slane %v38, 2
    %v612 = vsel %vm572, %v609, %v611
    %v613 = vrot.slane %v39, 2
    %v614 = vrot.slane %v40, 2
    %v615 = vsel %vm572, %v613, %v614
    %v616 = vrot.slane %v41, 2
    %v617 = vsel %vm572, %v614, %v616
    %v618 = vrot.slane %v42, 2
    %v619 = vrot.slane %v43, 2
    %v620 = vsel %vm572, %v618, %v619
    %v621 = vrot.slane %v44, 2
    %v622 = vsel %vm572, %v619, %v621
    %v623 = vrot.slane %v45, 2
    %v624 = vrot.slane %v46, 2
    %v625 = vsel %vm572, %v623, %v624
    %v626 = vrot.slane %v47, 2
    %v627 = vsel %vm572, %v624, %v626
    %v628 = vrot.slane %v48, 2
    %v629 = vrot.slane %v49, 2
    %v630 = vsel %vm572, %v628, %v629
    %v631 = vrot.slane %v50, 2
    %v632 = vsel %vm572, %v629, %v631
    %v633 = vrot.slane %v51, 2
    %v634 = vrot.slane %v52, 2
    %v635 = vsel %vm572, %v633, %v634
    %v636 = vrot.slane %v53, 2
    %v637 = vsel %vm572, %v634, %v636
    %v638 = vrot.slane %v54, 2
    %v639 = vrot.slane %v55, 2
    %v640 = vsel %vm572, %v638, %v639
    %v641 = vrot.slane %v56, 2
    %v642 = vsel %vm572, %v639, %v641
    %v643 = vrot.slane %v57, 2
    %v644 = vrot.slane %v58, 2
    %v645 = vsel %vm572, %v643, %v644
    %v646 = vrot.slane %v59, 2
    %v647 = vsel %vm572, %v644, %v646
    %v648 = vrot.slane %v60, 2
    %v649 = vrot.slane %v61, 2
    %v650 = vsel %vm572, %v648, %v649
    %v651 = vrot.slane %v62, 2
    %v652 = vsel %vm572, %v649, %v651
    %v653 = vrot.slane %v69, 2
    %v654 = vrot.slane %v70, 2
    %v655 = vsel %vm572, %v653, %v654
    %v656 = vrot.slane %v71, 2
    %v657 = vsel %vm572, %v654, %v656
    %v658 = vrot.slane %v72, 2
    %v659 = vrot.slane %v73, 2
    %v660 = vsel %vm572, %v658, %v659
    %v661 = vrot.slane %v74, 2
    %v662 = vsel %vm572, %v659, %v661
    %v663 = vrot.slane %v75, 2
    %v664 = vrot.slane %v76, 2
    %v665 = vsel %vm572, %v663, %v664
    %v666 = vrot.slane %v77, 2
    %v667 = vsel %vm572, %v664, %v666
    %v668 = vrot.slane %v78, 2
    %v669 = vrot.slane %v79, 2
    %v670 = vsel %vm572, %v668, %v669
    %v671 = vrot.slane %v80, 2
    %v672 = vsel %vm572, %v669, %v671
    %v673 = vrot.slane %v81, 2
    %v674 = vrot.slane %v82, 2
    %v675 = vsel %vm572, %v673, %v674
    %v676 = vrot.slane %v83, 2
    %v677 = vsel %vm572, %v674, %v676
    %v678 = vrot.slane %v84, 2
    %v679 = vrot.slane %v85, 2
    %v680 = vsel %vm572, %v678, %v679
    %v681 = vrot.slane %v86, 2
    %v682 = vsel %vm572, %v679, %v681
    %v683 = vrot.slane %v87, 2
    %v684 = vrot.slane %v88, 2
    %v685 = vsel %vm572, %v683, %v684
    %v686 = vrot.slane %v89, 2
    %v687 = vsel %vm572, %v684, %v686
    %v688 = vrot.slane %v90, 2
    %v689 = vrot.slane %v91, 2
    %v690 = vsel %vm572, %v688, %v689
    %v691 = vrot.slane %v92, 2
    %v692 = vsel %vm572, %v689, %v691
    %v693 = vrot.slane %v93, 2
    %v694 = vrot.slane %v94, 2
    %v695 = vsel %vm572, %v693, %v694
    %v696 = vrot.slane %v95, 2
    %v697 = vsel %vm572, %v694, %v696
    %v698 = vrot.slane %v96, 2
    %v699 = vrot.slane %v97, 2
    %v700 = vsel %vm572, %v698, %v699
    %v701 = vrot.slane %v98, 2
    %v702 = vsel %vm572, %v699, %v701
    %v703 = vrot.slane %v99, 2
    %v704 = vrot.slane %v100, 2
    %v705 = vsel %vm572, %v703, %v704
    %v706 = vrot.slane %v101, 2
    %v707 = vsel %vm572, %v704, %v706
    %v708 = vrot.slane %v102, 2
    %v709 = vrot.slane %v103, 2
    %v710 = vsel %vm572, %v708, %v709
    %v711 = vrot.slane %v104, 2
    %v712 = vsel %vm572, %v709, %v711
    %v713 = vrot.slane %v105, 2
    %v714 = vrot.slane %v106, 2
    %v715 = vsel %vm572, %v713, %v714
    %v716 = vrot.slane %v107, 2
    %v717 = vsel %vm572, %v714, %v716
    %v718 = vrot.slane %v108, 2
    %v719 = vrot.slane %v109, 2
    %v720 = vsel %vm572, %v718, %v719
    %v721 = vrot.slane %v110, 2
    %v722 = vsel %vm572, %v719, %v721
    %v723 = vrot.slane %v111, 2
    %v724 = vrot.slane %v112, 2
    %v725 = vsel %vm572, %v723, %v724
    %v726 = vrot.slane %v113, 2
    %v727 = vsel %vm572, %v724, %v726
    %v728 = vrot.slane %v114, 2
    %v729 = vrot.slane %v115, 2
    %v730 = vsel %vm572, %v728, %v729
    %v731 = vrot.slane %v116, 2
    %v732 = vsel %vm572, %v729, %v731
    %733 = vrot.lane.b32.xlu0 %v575, 8
    %v734 = vpop.permute.xlu0 %733
    %735 = vrot.lane.b32.xlu0 %v577, 8
    %v736 = vpop.permute.xlu0 %735
    %737 = vrot.lane.b32.xlu0 %v580, 8
    %v738 = vpop.permute.xlu0 %737
    %739 = vrot.lane.b32.xlu0 %v582, 8
    %v740 = vpop.permute.xlu0 %739
    %741 = vrot.lane.b32.xlu0 %v585, 8
    %v742 = vpop.permute.xlu0 %741
    %743 = vrot.lane.b32.xlu0 %v587, 8
    %v744 = vpop.permute.xlu0 %743
    %745 = vrot.lane.b32.xlu0 %v590, 8
    %v746 = vpop.permute.xlu0 %745
    %747 = vrot.lane.b32.xlu0 %v592, 8
    %v748 = vpop.permute.xlu0 %747
    %749 = vrot.lane.b32.xlu0 %v595, 8
    %v750 = vpop.permute.xlu0 %749
    %751 = vrot.lane.b32.xlu0 %v597, 8
    %v752 = vpop.permute.xlu0 %751
    %753 = vrot.lane.b32.xlu0 %v600, 8
    %v754 = vpop.permute.xlu0 %753
    %755 = vrot.lane.b32.xlu0 %v602, 8
    %v756 = vpop.permute.xlu0 %755
    %757 = vrot.lane.b32.xlu0 %v605, 8
    %v758 = vpop.permute.xlu0 %757
    %759 = vrot.lane.b32.xlu0 %v607, 8
    %v760 = vpop.permute.xlu0 %759
    %761 = vrot.lane.b32.xlu0 %v610, 8
    %v762 = vpop.permute.xlu0 %761
    %763 = vrot.lane.b32.xlu0 %v612, 8
    %v764 = vpop.permute.xlu0 %763
    %765 = vrot.lane.b32.xlu0 %v615, 8
    %v766 = vpop.permute.xlu0 %765
    %767 = vrot.lane.b32.xlu0 %v617, 8
    %v768 = vpop.permute.xlu0 %767
    %769 = vrot.lane.b32.xlu0 %v620, 8
    %v770 = vpop.permute.xlu0 %769
    %771 = vrot.lane.b32.xlu0 %v622, 8
    %v772 = vpop.permute.xlu0 %771
    %773 = vrot.lane.b32.xlu0 %v625, 8
    %v774 = vpop.permute.xlu0 %773
    %775 = vrot.lane.b32.xlu0 %v627, 8
    %v776 = vpop.permute.xlu0 %775
    %777 = vrot.lane.b32.xlu0 %v630, 8
    %v778 = vpop.permute.xlu0 %777
    %779 = vrot.lane.b32.xlu0 %v632, 8
    %v780 = vpop.permute.xlu0 %779
    %781 = vrot.lane.b32.xlu0 %v635, 8
    %v782 = vpop.permute.xlu0 %781
    %783 = vrot.lane.b32.xlu0 %v637, 8
    %v784 = vpop.permute.xlu0 %783
    %785 = vrot.lane.b32.xlu0 %v640, 8
    %v786 = vpop.permute.xlu0 %785
    %787 = vrot.lane.b32.xlu0 %v642, 8
    %v788 = vpop.permute.xlu0 %787
    %789 = vrot.lane.b32.xlu0 %v645, 8
    %v790 = vpop.permute.xlu0 %789
    %791 = vrot.lane.b32.xlu0 %v647, 8
    %v792 = vpop.permute.xlu0 %791
    %793 = vrot.lane.b32.xlu0 %v650, 8
    %v794 = vpop.permute.xlu0 %793
    %795 = vrot.lane.b32.xlu0 %v652, 8
    %v796 = vpop.permute.xlu0 %795
    %797 = vrot.lane.b32.xlu0 %v655, 8
    %v798 = vpop.permute.xlu0 %797
    %799 = vrot.lane.b32.xlu0 %v657, 8
    %v800 = vpop.permute.xlu0 %799
    %801 = vrot.lane.b32.xlu0 %v660, 8
    %v802 = vpop.permute.xlu0 %801
    %803 = vrot.lane.b32.xlu0 %v662, 8
    %v804 = vpop.permute.xlu0 %803
    %805 = vrot.lane.b32.xlu0 %v665, 8
    %v806 = vpop.permute.xlu0 %805
    %807 = vrot.lane.b32.xlu0 %v667, 8
    %v808 = vpop.permute.xlu0 %807
    %809 = vrot.lane.b32.xlu0 %v670, 8
    %v810 = vpop.permute.xlu0 %809
    %811 = vrot.lane.b32.xlu0 %v672, 8
    %v812 = vpop.permute.xlu0 %811
    %813 = vrot.lane.b32.xlu0 %v675, 8
    %v814 = vpop.permute.xlu0 %813
    %815 = vrot.lane.b32.xlu0 %v677, 8
    %v816 = vpop.permute.xlu0 %815
    %817 = vrot.lane.b32.xlu0 %v680, 8
    %v818 = vpop.permute.xlu0 %817
    %819 = vrot.lane.b32.xlu0 %v682, 8
    %v820 = vpop.permute.xlu0 %819
    %821 = vrot.lane.b32.xlu0 %v685, 8
    %v822 = vpop.permute.xlu0 %821
    %823 = vrot.lane.b32.xlu0 %v687, 8
    %v824 = vpop.permute.xlu0 %823
    %825 = vrot.lane.b32.xlu0 %v690, 8
    %v826 = vpop.permute.xlu0 %825
    %827 = vrot.lane.b32.xlu0 %v692, 8
    %v828 = vpop.permute.xlu0 %827
    %829 = vrot.lane.b32.xlu0 %v695, 8
    %v830 = vpop.permute.xlu0 %829
    %831 = vrot.lane.b32.xlu0 %v697, 8
    %v832 = vpop.permute.xlu0 %831
    %833 = vrot.lane.b32.xlu0 %v700, 8
    %v834 = vpop.permute.xlu0 %833
    %835 = vrot.lane.b32.xlu0 %v702, 8
    %v836 = vpop.permute.xlu0 %835
    %837 = vrot.lane.b32.xlu0 %v705, 8
    %v838 = vpop.permute.xlu0 %837
    %839 = vrot.lane.b32.xlu0 %v707, 8
    %v840 = vpop.permute.xlu0 %839
    %841 = vrot.lane.b32.xlu0 %v710, 8
    %v842 = vpop.permute.xlu0 %841
    %843 = vrot.lane.b32.xlu0 %v712, 8
    %v844 = vpop.permute.xlu0 %843
    %845 = vrot.lane.b32.xlu0 %v715, 8
    %v846 = vpop.permute.xlu0 %845
    %847 = vrot.lane.b32.xlu0 %v717, 8
    %v848 = vpop.permute.xlu0 %847
    %849 = vrot.lane.b32.xlu0 %v720, 8
    %v850 = vpop.permute.xlu0 %849
    %851 = vrot.lane.b32.xlu0 %v722, 8
    %v852 = vpop.permute.xlu0 %851
    %853 = vrot.lane.b32.xlu0 %v725, 8
    %v854 = vpop.permute.xlu0 %853
    %855 = vrot.lane.b32.xlu0 %v727, 8
    %v856 = vpop.permute.xlu0 %855
    %857 = vrot.lane.b32.xlu0 %v730, 8
    %v858 = vpop.permute.xlu0 %857
    %859 = vrot.lane.b32.xlu0 %v732, 8
    %v860 = vpop.permute.xlu0 %859
    %929 = vrot.lane.b32.xlu0 %v18, 12
    %v930 = vpop.permute.xlu0 %929
    %931 = vrot.lane.b32.xlu0 %v19, 12
    %v932 = vpop.permute.xlu0 %931
    %933 = vrot.lane.b32.xlu0 %v21, 12
    %v934 = vpop.permute.xlu0 %933
    %935 = vrot.lane.b32.xlu0 %v22, 12
    %v936 = vpop.permute.xlu0 %935
    %937 = vrot.lane.b32.xlu0 %v24, 12
    %v938 = vpop.permute.xlu0 %937
    %939 = vrot.lane.b32.xlu0 %v25, 12
    %v940 = vpop.permute.xlu0 %939
    %941 = vrot.lane.b32.xlu0 %v27, 12
    %v942 = vpop.permute.xlu0 %941
    %943 = vrot.lane.b32.xlu0 %v28, 12
    %v944 = vpop.permute.xlu0 %943
    %945 = vrot.lane.b32.xlu0 %v30, 12
    %v946 = vpop.permute.xlu0 %945
    %947 = vrot.lane.b32.xlu0 %v31, 12
    %v948 = vpop.permute.xlu0 %947
    %949 = vrot.lane.b32.xlu0 %v33, 12
    %v950 = vpop.permute.xlu0 %949
    %951 = vrot.lane.b32.xlu0 %v34, 12
    %v952 = vpop.permute.xlu0 %951
    %953 = vrot.lane.b32.xlu0 %v36, 12
    %v954 = vpop.permute.xlu0 %953
    %955 = vrot.lane.b32.xlu0 %v37, 12
    %v956 = vpop.permute.xlu0 %955
    %957 = vrot.lane.b32.xlu0 %v39, 12
    %v958 = vpop.permute.xlu0 %957
    %959 = vrot.lane.b32.xlu0 %v40, 12
    %v960 = vpop.permute.xlu0 %959
    %961 = vrot.lane.b32.xlu0 %v42, 12
    %v962 = vpop.permute.xlu0 %961
    %963 = vrot.lane.b32.xlu0 %v43, 12
    %v964 = vpop.permute.xlu0 %963
    %965 = vrot.lane.b32.xlu0 %v45, 12
    %v966 = vpop.permute.xlu0 %965
    %967 = vrot.lane.b32.xlu0 %v46, 12
    %v968 = vpop.permute.xlu0 %967
    %969 = vrot.lane.b32.xlu0 %v48, 12
    %v970 = vpop.permute.xlu0 %969
    %971 = vrot.lane.b32.xlu0 %v49, 12
    %v972 = vpop.permute.xlu0 %971
    %973 = vrot.lane.b32.xlu0 %v51, 12
    %v974 = vpop.permute.xlu0 %973
    %975 = vrot.lane.b32.xlu0 %v52, 12
    %v976 = vpop.permute.xlu0 %975
    %977 = vrot.lane.b32.xlu0 %v54, 12
    %v978 = vpop.permute.xlu0 %977
    %979 = vrot.lane.b32.xlu0 %v55, 12
    %v980 = vpop.permute.xlu0 %979
    %981 = vrot.lane.b32.xlu0 %v57, 12
    %v982 = vpop.permute.xlu0 %981
    %983 = vrot.lane.b32.xlu0 %v58, 12
    %v984 = vpop.permute.xlu0 %983
    %985 = vrot.lane.b32.xlu0 %v60, 12
    %v986 = vpop.permute.xlu0 %985
    %987 = vrot.lane.b32.xlu0 %v61, 12
    %v988 = vpop.permute.xlu0 %987
    %989 = vrot.lane.b32.xlu0 %v63, 12
    %v990 = vpop.permute.xlu0 %989
    %991 = vrot.lane.b32.xlu0 %v64, 12
    %v992 = vpop.permute.xlu0 %991
    %993 = vrot.lane.b32.xlu0 %v72, 12
    %v994 = vpop.permute.xlu0 %993
    %995 = vrot.lane.b32.xlu0 %v73, 12
    %v996 = vpop.permute.xlu0 %995
    %997 = vrot.lane.b32.xlu0 %v75, 12
    %v998 = vpop.permute.xlu0 %997
    %999 = vrot.lane.b32.xlu0 %v76, 12
    %v1000 = vpop.permute.xlu0 %999
    %1001 = vrot.lane.b32.xlu0 %v78, 12
    %v1002 = vpop.permute.xlu0 %1001
    %1003 = vrot.lane.b32.xlu0 %v79, 12
    %v1004 = vpop.permute.xlu0 %1003
    %1005 = vrot.lane.b32.xlu0 %v81, 12
    %v1006 = vpop.permute.xlu0 %1005
    %1007 = vrot.lane.b32.xlu0 %v82, 12
    %v1008 = vpop.permute.xlu0 %1007
    %1009 = vrot.lane.b32.xlu0 %v84, 12
    %v1010 = vpop.permute.xlu0 %1009
    %1011 = vrot.lane.b32.xlu0 %v85, 12
    %v1012 = vpop.permute.xlu0 %1011
    %1013 = vrot.lane.b32.xlu0 %v87, 12
    %v1014 = vpop.permute.xlu0 %1013
    %1015 = vrot.lane.b32.xlu0 %v88, 12
    %v1016 = vpop.permute.xlu0 %1015
    %1017 = vrot.lane.b32.xlu0 %v90, 12
    %v1018 = vpop.permute.xlu0 %1017
    %1019 = vrot.lane.b32.xlu0 %v91, 12
    %v1020 = vpop.permute.xlu0 %1019
    %1021 = vrot.lane.b32.xlu0 %v93, 12
    %v1022 = vpop.permute.xlu0 %1021
    %1023 = vrot.lane.b32.xlu0 %v94, 12
    %v1024 = vpop.permute.xlu0 %1023
    %1025 = vrot.lane.b32.xlu0 %v96, 12
    %v1026 = vpop.permute.xlu0 %1025
    %1027 = vrot.lane.b32.xlu0 %v97, 12
    %v1028 = vpop.permute.xlu0 %1027
    %1029 = vrot.lane.b32.xlu0 %v99, 12
    %v1030 = vpop.permute.xlu0 %1029
    %1031 = vrot.lane.b32.xlu0 %v100, 12
    %v1032 = vpop.permute.xlu0 %1031
    %1033 = vrot.lane.b32.xlu0 %v102, 12
    %v1034 = vpop.permute.xlu0 %1033
    %1035 = vrot.lane.b32.xlu0 %v103, 12
    %v1036 = vpop.permute.xlu0 %1035
    %1037 = vrot.lane.b32.xlu0 %v105, 12
    %v1038 = vpop.permute.xlu0 %1037
    %1039 = vrot.lane.b32.xlu0 %v106, 12
    %v1040 = vpop.permute.xlu0 %1039
    %1041 = vrot.lane.b32.xlu0 %v108, 12
    %v1042 = vpop.permute.xlu0 %1041
    %1043 = vrot.lane.b32.xlu0 %v109, 12
    %v1044 = vpop.permute.xlu0 %1043
    %1045 = vrot.lane.b32.xlu0 %v111, 12
    %v1046 = vpop.permute.xlu0 %1045
    %1047 = vrot.lane.b32.xlu0 %v112, 12
    %v1048 = vpop.permute.xlu0 %1047
    %1049 = vrot.lane.b32.xlu0 %v114, 12
    %v1050 = vpop.permute.xlu0 %1049
    %1051 = vrot.lane.b32.xlu0 %v115, 12
    %v1052 = vpop.permute.xlu0 %1051
    %1053 = vrot.lane.b32.xlu0 %v117, 12
    %v1054 = vpop.permute.xlu0 %1053
    %1055 = vrot.lane.b32.xlu0 %v118, 12
    %v1056 = vpop.permute.xlu0 %1055
    %v1123 = vrot.slane %v63, 1
    %v1124 = vrot.slane %v64, 1
    %v1125 = vsel %vm219, %v1123, %v1124
    %v1126 = vrot.slane %v65, 1
    %v1127 = vsel %vm219, %v1124, %v1126
    %v1128 = vrot.slane %v117, 1
    %v1129 = vrot.slane %v118, 1
    %v1130 = vsel %vm219, %v1128, %v1129
    %v1131 = vrot.slane %v119, 1
    %v1132 = vsel %vm219, %v1129, %v1131
    %1133 = vrot.lane.b32.xlu0 %v227, 16
    %v1134 = vpop.permute.xlu0 %1133
    %1135 = vrot.lane.b32.xlu0 %v229, 16
    %v1136 = vpop.permute.xlu0 %1135
    %1137 = vrot.lane.b32.xlu0 %v232, 16
    %v1138 = vpop.permute.xlu0 %1137
    %1139 = vrot.lane.b32.xlu0 %v234, 16
    %v1140 = vpop.permute.xlu0 %1139
    %1141 = vrot.lane.b32.xlu0 %v237, 16
    %v1142 = vpop.permute.xlu0 %1141
    %1143 = vrot.lane.b32.xlu0 %v239, 16
    %v1144 = vpop.permute.xlu0 %1143
    %1145 = vrot.lane.b32.xlu0 %v242, 16
    %v1146 = vpop.permute.xlu0 %1145
    %1147 = vrot.lane.b32.xlu0 %v244, 16
    %v1148 = vpop.permute.xlu0 %1147
    %1149 = vrot.lane.b32.xlu0 %v247, 16
    %v1150 = vpop.permute.xlu0 %1149
    %1151 = vrot.lane.b32.xlu0 %v249, 16
    %v1152 = vpop.permute.xlu0 %1151
    %1153 = vrot.lane.b32.xlu0 %v252, 16
    %v1154 = vpop.permute.xlu0 %1153
    %1155 = vrot.lane.b32.xlu0 %v254, 16
    %v1156 = vpop.permute.xlu0 %1155
    %1157 = vrot.lane.b32.xlu0 %v257, 16
    %v1158 = vpop.permute.xlu0 %1157
    %1159 = vrot.lane.b32.xlu0 %v259, 16
    %v1160 = vpop.permute.xlu0 %1159
    %1161 = vrot.lane.b32.xlu0 %v262, 16
    %v1162 = vpop.permute.xlu0 %1161
    %1163 = vrot.lane.b32.xlu0 %v264, 16
    %v1164 = vpop.permute.xlu0 %1163
    %1165 = vrot.lane.b32.xlu0 %v267, 16
    %v1166 = vpop.permute.xlu0 %1165
    %1167 = vrot.lane.b32.xlu0 %v269, 16
    %v1168 = vpop.permute.xlu0 %1167
    %1169 = vrot.lane.b32.xlu0 %v272, 16
    %v1170 = vpop.permute.xlu0 %1169
    %1171 = vrot.lane.b32.xlu0 %v274, 16
    %v1172 = vpop.permute.xlu0 %1171
    %1173 = vrot.lane.b32.xlu0 %v277, 16
    %v1174 = vpop.permute.xlu0 %1173
    %1175 = vrot.lane.b32.xlu0 %v279, 16
    %v1176 = vpop.permute.xlu0 %1175
    %1177 = vrot.lane.b32.xlu0 %v282, 16
    %v1178 = vpop.permute.xlu0 %1177
    %1179 = vrot.lane.b32.xlu0 %v284, 16
    %v1180 = vpop.permute.xlu0 %1179
    %1181 = vrot.lane.b32.xlu0 %v287, 16
    %v1182 = vpop.permute.xlu0 %1181
    %1183 = vrot.lane.b32.xlu0 %v289, 16
    %v1184 = vpop.permute.xlu0 %1183
    %1185 = vrot.lane.b32.xlu0 %v292, 16
    %v1186 = vpop.permute.xlu0 %1185
    %1187 = vrot.lane.b32.xlu0 %v294, 16
    %v1188 = vpop.permute.xlu0 %1187
    %1189 = vrot.lane.b32.xlu0 %v297, 16
    %v1190 = vpop.permute.xlu0 %1189
    %1191 = vrot.lane.b32.xlu0 %v299, 16
    %v1192 = vpop.permute.xlu0 %1191
    %1193 = vrot.lane.b32.xlu0 %v1125, 16
    %v1194 = vpop.permute.xlu0 %1193
    %1195 = vrot.lane.b32.xlu0 %v1127, 16
    %v1196 = vpop.permute.xlu0 %1195
    %1197 = vrot.lane.b32.xlu0 %v307, 16
    %v1198 = vpop.permute.xlu0 %1197
    %1199 = vrot.lane.b32.xlu0 %v309, 16
    %v1200 = vpop.permute.xlu0 %1199
    %1201 = vrot.lane.b32.xlu0 %v312, 16
    %v1202 = vpop.permute.xlu0 %1201
    %1203 = vrot.lane.b32.xlu0 %v314, 16
    %v1204 = vpop.permute.xlu0 %1203
    %1205 = vrot.lane.b32.xlu0 %v317, 16
    %v1206 = vpop.permute.xlu0 %1205
    %1207 = vrot.lane.b32.xlu0 %v319, 16
    %v1208 = vpop.permute.xlu0 %1207
    %1209 = vrot.lane.b32.xlu0 %v322, 16
    %v1210 = vpop.permute.xlu0 %1209
    %1211 = vrot.lane.b32.xlu0 %v324, 16
    %v1212 = vpop.permute.xlu0 %1211
    %1213 = vrot.lane.b32.xlu0 %v327, 16
    %v1214 = vpop.permute.xlu0 %1213
    %1215 = vrot.lane.b32.xlu0 %v329, 16
    %v1216 = vpop.permute.xlu0 %1215
    %1217 = vrot.lane.b32.xlu0 %v332, 16
    %v1218 = vpop.permute.xlu0 %1217
    %1219 = vrot.lane.b32.xlu0 %v334, 16
    %v1220 = vpop.permute.xlu0 %1219
    %1221 = vrot.lane.b32.xlu0 %v337, 16
    %v1222 = vpop.permute.xlu0 %1221
    %1223 = vrot.lane.b32.xlu0 %v339, 16
    %v1224 = vpop.permute.xlu0 %1223
    %1225 = vrot.lane.b32.xlu0 %v342, 16
    %v1226 = vpop.permute.xlu0 %1225
    %1227 = vrot.lane.b32.xlu0 %v344, 16
    %v1228 = vpop.permute.xlu0 %1227
    %1229 = vrot.lane.b32.xlu0 %v347, 16
    %v1230 = vpop.permute.xlu0 %1229
    %1231 = vrot.lane.b32.xlu0 %v349, 16
    %v1232 = vpop.permute.xlu0 %1231
    %1233 = vrot.lane.b32.xlu0 %v352, 16
    %v1234 = vpop.permute.xlu0 %1233
    %1235 = vrot.lane.b32.xlu0 %v354, 16
    %v1236 = vpop.permute.xlu0 %1235
    %1237 = vrot.lane.b32.xlu0 %v357, 16
    %v1238 = vpop.permute.xlu0 %1237
    %1239 = vrot.lane.b32.xlu0 %v359, 16
    %v1240 = vpop.permute.xlu0 %1239
    %1241 = vrot.lane.b32.xlu0 %v362, 16
    %v1242 = vpop.permute.xlu0 %1241
    %1243 = vrot.lane.b32.xlu0 %v364, 16
    %v1244 = vpop.permute.xlu0 %1243
    %1245 = vrot.lane.b32.xlu0 %v367, 16
    %v1246 = vpop.permute.xlu0 %1245
    %1247 = vrot.lane.b32.xlu0 %v369, 16
    %v1248 = vpop.permute.xlu0 %1247
    %1249 = vrot.lane.b32.xlu0 %v372, 16
    %v1250 = vpop.permute.xlu0 %1249
    %1251 = vrot.lane.b32.xlu0 %v374, 16
    %v1252 = vpop.permute.xlu0 %1251
    %1253 = vrot.lane.b32.xlu0 %v377, 16
    %v1254 = vpop.permute.xlu0 %1253
    %1255 = vrot.lane.b32.xlu0 %v379, 16
    %v1256 = vpop.permute.xlu0 %1255
    %1257 = vrot.lane.b32.xlu0 %v1130, 16
    %v1258 = vpop.permute.xlu0 %1257
    %1259 = vrot.lane.b32.xlu0 %v1132, 16
    %v1260 = vpop.permute.xlu0 %1259
    %v1325 = vrot.slane %v63, 2
    %v1326 = vrot.slane %v64, 2
    %v1327 = vsel %vm572, %v1325, %v1326
    %v1328 = vrot.slane %v65, 2
    %v1329 = vsel %vm572, %v1326, %v1328
    %v1330 = vrot.slane %v117, 2
    %v1331 = vrot.slane %v118, 2
    %v1332 = vsel %vm572, %v1330, %v1331
    %v1333 = vrot.slane %v119, 2
    %v1334 = vsel %vm572, %v1331, %v1333
    %1335 = vrot.lane.b32.xlu0 %v580, 20
    %v1336 = vpop.permute.xlu0 %1335
    %1337 = vrot.lane.b32.xlu0 %v582, 20
    %v1338 = vpop.permute.xlu0 %1337
    %1339 = vrot.lane.b32.xlu0 %v585, 20
    %v1340 = vpop.permute.xlu0 %1339
    %1341 = vrot.lane.b32.xlu0 %v587, 20
    %v1342 = vpop.permute.xlu0 %1341
    %1343 = vrot.lane.b32.xlu0 %v590, 20
    %v1344 = vpop.permute.xlu0 %1343
    %1345 = vrot.lane.b32.xlu0 %v592, 20
    %v1346 = vpop.permute.xlu0 %1345
    %1347 = vrot.lane.b32.xlu0 %v595, 20
    %v1348 = vpop.permute.xlu0 %1347
    %1349 = vrot.lane.b32.xlu0 %v597, 20
    %v1350 = vpop.permute.xlu0 %1349
    %1351 = vrot.lane.b32.xlu0 %v600, 20
    %v1352 = vpop.permute.xlu0 %1351
    %1353 = vrot.lane.b32.xlu0 %v602, 20
    %v1354 = vpop.permute.xlu0 %1353
    %1355 = vrot.lane.b32.xlu0 %v605, 20
    %v1356 = vpop.permute.xlu0 %1355
    %1357 = vrot.lane.b32.xlu0 %v607, 20
    %v1358 = vpop.permute.xlu0 %1357
    %1359 = vrot.lane.b32.xlu0 %v610, 20
    %v1360 = vpop.permute.xlu0 %1359
    %1361 = vrot.lane.b32.xlu0 %v612, 20
    %v1362 = vpop.permute.xlu0 %1361
    %1363 = vrot.lane.b32.xlu0 %v615, 20
    %v1364 = vpop.permute.xlu0 %1363
    %1365 = vrot.lane.b32.xlu0 %v617, 20
    %v1366 = vpop.permute.xlu0 %1365
    %1367 = vrot.lane.b32.xlu0 %v620, 20
    %v1368 = vpop.permute.xlu0 %1367
    %1369 = vrot.lane.b32.xlu0 %v622, 20
    %v1370 = vpop.permute.xlu0 %1369
    %1371 = vrot.lane.b32.xlu0 %v625, 20
    %v1372 = vpop.permute.xlu0 %1371
    %1373 = vrot.lane.b32.xlu0 %v627, 20
    %v1374 = vpop.permute.xlu0 %1373
    %1375 = vrot.lane.b32.xlu0 %v630, 20
    %v1376 = vpop.permute.xlu0 %1375
    %1377 = vrot.lane.b32.xlu0 %v632, 20
    %v1378 = vpop.permute.xlu0 %1377
    %1379 = vrot.lane.b32.xlu0 %v635, 20
    %v1380 = vpop.permute.xlu0 %1379
    %1381 = vrot.lane.b32.xlu0 %v637, 20
    %v1382 = vpop.permute.xlu0 %1381
    %1383 = vrot.lane.b32.xlu0 %v640, 20
    %v1384 = vpop.permute.xlu0 %1383
    %1385 = vrot.lane.b32.xlu0 %v642, 20
    %v1386 = vpop.permute.xlu0 %1385
    %1387 = vrot.lane.b32.xlu0 %v645, 20
    %v1388 = vpop.permute.xlu0 %1387
    %1389 = vrot.lane.b32.xlu0 %v647, 20
    %v1390 = vpop.permute.xlu0 %1389
    %1391 = vrot.lane.b32.xlu0 %v650, 20
    %v1392 = vpop.permute.xlu0 %1391
    %1393 = vrot.lane.b32.xlu0 %v652, 20
    %v1394 = vpop.permute.xlu0 %1393
    %1395 = vrot.lane.b32.xlu0 %v1327, 20
    %v1396 = vpop.permute.xlu0 %1395
    %1397 = vrot.lane.b32.xlu0 %v1329, 20
    %v1398 = vpop.permute.xlu0 %1397
    %1399 = vrot.lane.b32.xlu0 %v660, 20
    %v1400 = vpop.permute.xlu0 %1399
    %1401 = vrot.lane.b32.xlu0 %v662, 20
    %v1402 = vpop.permute.xlu0 %1401
    %1403 = vrot.lane.b32.xlu0 %v665, 20
    %v1404 = vpop.permute.xlu0 %1403
    %1405 = vrot.lane.b32.xlu0 %v667, 20
    %v1406 = vpop.permute.xlu0 %1405
    %1407 = vrot.lane.b32.xlu0 %v670, 20
    %v1408 = vpop.permute.xlu0 %1407
    %1409 = vrot.lane.b32.xlu0 %v672, 20
    %v1410 = vpop.permute.xlu0 %1409
    %1411 = vrot.lane.b32.xlu0 %v675, 20
    %v1412 = vpop.permute.xlu0 %1411
    %1413 = vrot.lane.b32.xlu0 %v677, 20
    %v1414 = vpop.permute.xlu0 %1413
    %1415 = vrot.lane.b32.xlu0 %v680, 20
    %v1416 = vpop.permute.xlu0 %1415
    %1417 = vrot.lane.b32.xlu0 %v682, 20
    %v1418 = vpop.permute.xlu0 %1417
    %1419 = vrot.lane.b32.xlu0 %v685, 20
    %v1420 = vpop.permute.xlu0 %1419
    %1421 = vrot.lane.b32.xlu0 %v687, 20
    %v1422 = vpop.permute.xlu0 %1421
    %1423 = vrot.lane.b32.xlu0 %v690, 20
    %v1424 = vpop.permute.xlu0 %1423
    %1425 = vrot.lane.b32.xlu0 %v692, 20
    %v1426 = vpop.permute.xlu0 %1425
    %1427 = vrot.lane.b32.xlu0 %v695, 20
    %v1428 = vpop.permute.xlu0 %1427
    %1429 = vrot.lane.b32.xlu0 %v697, 20
    %v1430 = vpop.permute.xlu0 %1429
    %1431 = vrot.lane.b32.xlu0 %v700, 20
    %v1432 = vpop.permute.xlu0 %1431
    %1433 = vrot.lane.b32.xlu0 %v702, 20
    %v1434 = vpop.permute.xlu0 %1433
    %1435 = vrot.lane.b32.xlu0 %v705, 20
    %v1436 = vpop.permute.xlu0 %1435
    %1437 = vrot.lane.b32.xlu0 %v707, 20
    %v1438 = vpop.permute.xlu0 %1437
    %1439 = vrot.lane.b32.xlu0 %v710, 20
    %v1440 = vpop.permute.xlu0 %1439
    %1441 = vrot.lane.b32.xlu0 %v712, 20
    %v1442 = vpop.permute.xlu0 %1441
    %1443 = vrot.lane.b32.xlu0 %v715, 20
    %v1444 = vpop.permute.xlu0 %1443
    %1445 = vrot.lane.b32.xlu0 %v717, 20
    %v1446 = vpop.permute.xlu0 %1445
    %1447 = vrot.lane.b32.xlu0 %v720, 20
    %v1448 = vpop.permute.xlu0 %1447
    %1449 = vrot.lane.b32.xlu0 %v722, 20
    %v1450 = vpop.permute.xlu0 %1449
    %1451 = vrot.lane.b32.xlu0 %v725, 20
    %v1452 = vpop.permute.xlu0 %1451
    %1453 = vrot.lane.b32.xlu0 %v727, 20
    %v1454 = vpop.permute.xlu0 %1453
    %1455 = vrot.lane.b32.xlu0 %v730, 20
    %v1456 = vpop.permute.xlu0 %1455
    %1457 = vrot.lane.b32.xlu0 %v732, 20
    %v1458 = vpop.permute.xlu0 %1457
    %1459 = vrot.lane.b32.xlu0 %v1332, 20
    %v1460 = vpop.permute.xlu0 %1459
    %1461 = vrot.lane.b32.xlu0 %v1334, 20
    %v1462 = vpop.permute.xlu0 %1461
    %1531 = vrot.lane.b32.xlu0 %v21, 24
    %v1532 = vpop.permute.xlu0 %1531
    %1533 = vrot.lane.b32.xlu0 %v22, 24
    %v1534 = vpop.permute.xlu0 %1533
    %1535 = vrot.lane.b32.xlu0 %v24, 24
    %v1536 = vpop.permute.xlu0 %1535
    %1537 = vrot.lane.b32.xlu0 %v25, 24
    %v1538 = vpop.permute.xlu0 %1537
    %1539 = vrot.lane.b32.xlu0 %v27, 24
    %v1540 = vpop.permute.xlu0 %1539
    %1541 = vrot.lane.b32.xlu0 %v28, 24
    %v1542 = vpop.permute.xlu0 %1541
    %1543 = vrot.lane.b32.xlu0 %v30, 24
    %v1544 = vpop.permute.xlu0 %1543
    %1545 = vrot.lane.b32.xlu0 %v31, 24
    %v1546 = vpop.permute.xlu0 %1545
    %1547 = vrot.lane.b32.xlu0 %v33, 24
    %v1548 = vpop.permute.xlu0 %1547
    %1549 = vrot.lane.b32.xlu0 %v34, 24
    %v1550 = vpop.permute.xlu0 %1549
    %1551 = vrot.lane.b32.xlu0 %v36, 24
    %v1552 = vpop.permute.xlu0 %1551
    %1553 = vrot.lane.b32.xlu0 %v37, 24
    %v1554 = vpop.permute.xlu0 %1553
    %1555 = vrot.lane.b32.xlu0 %v39, 24
    %v1556 = vpop.permute.xlu0 %1555
    %1557 = vrot.lane.b32.xlu0 %v40, 24
    %v1558 = vpop.permute.xlu0 %1557
    %1559 = vrot.lane.b32.xlu0 %v42, 24
    %v1560 = vpop.permute.xlu0 %1559
    %1561 = vrot.lane.b32.xlu0 %v43, 24
    %v1562 = vpop.permute.xlu0 %1561
    %1563 = vrot.lane.b32.xlu0 %v45, 24
    %v1564 = vpop.permute.xlu0 %1563
    %1565 = vrot.lane.b32.xlu0 %v46, 24
    %v1566 = vpop.permute.xlu0 %1565
    %1567 = vrot.lane.b32.xlu0 %v48, 24
    %v1568 = vpop.permute.xlu0 %1567
    %1569 = vrot.lane.b32.xlu0 %v49, 24
    %v1570 = vpop.permute.xlu0 %1569
    %1571 = vrot.lane.b32.xlu0 %v51, 24
    %v1572 = vpop.permute.xlu0 %1571
    %1573 = vrot.lane.b32.xlu0 %v52, 24
    %v1574 = vpop.permute.xlu0 %1573
    %1575 = vrot.lane.b32.xlu0 %v54, 24
    %v1576 = vpop.permute.xlu0 %1575
    %1577 = vrot.lane.b32.xlu0 %v55, 24
    %v1578 = vpop.permute.xlu0 %1577
    %1579 = vrot.lane.b32.xlu0 %v57, 24
    %v1580 = vpop.permute.xlu0 %1579
    %1581 = vrot.lane.b32.xlu0 %v58, 24
    %v1582 = vpop.permute.xlu0 %1581
    %1583 = vrot.lane.b32.xlu0 %v60, 24
    %v1584 = vpop.permute.xlu0 %1583
    %1585 = vrot.lane.b32.xlu0 %v61, 24
    %v1586 = vpop.permute.xlu0 %1585
    %1587 = vrot.lane.b32.xlu0 %v63, 24
    %v1588 = vpop.permute.xlu0 %1587
    %1589 = vrot.lane.b32.xlu0 %v64, 24
    %v1590 = vpop.permute.xlu0 %1589
    %1591 = vrot.lane.b32.xlu0 %v66, 24
    %v1592 = vpop.permute.xlu0 %1591
    %1593 = vrot.lane.b32.xlu0 %v67, 24
    %v1594 = vpop.permute.xlu0 %1593
    %1595 = vrot.lane.b32.xlu0 %v75, 24
    %v1596 = vpop.permute.xlu0 %1595
    %1597 = vrot.lane.b32.xlu0 %v76, 24
    %v1598 = vpop.permute.xlu0 %1597
    %1599 = vrot.lane.b32.xlu0 %v78, 24
    %v1600 = vpop.permute.xlu0 %1599
    %1601 = vrot.lane.b32.xlu0 %v79, 24
    %v1602 = vpop.permute.xlu0 %1601
    %1603 = vrot.lane.b32.xlu0 %v81, 24
    %v1604 = vpop.permute.xlu0 %1603
    %1605 = vrot.lane.b32.xlu0 %v82, 24
    %v1606 = vpop.permute.xlu0 %1605
    %1607 = vrot.lane.b32.xlu0 %v84, 24
    %v1608 = vpop.permute.xlu0 %1607
    %1609 = vrot.lane.b32.xlu0 %v85, 24
    %v1610 = vpop.permute.xlu0 %1609
    %1611 = vrot.lane.b32.xlu0 %v87, 24
    %v1612 = vpop.permute.xlu0 %1611
    %1613 = vrot.lane.b32.xlu0 %v88, 24
    %v1614 = vpop.permute.xlu0 %1613
    %1615 = vrot.lane.b32.xlu0 %v90, 24
    %v1616 = vpop.permute.xlu0 %1615
    %1617 = vrot.lane.b32.xlu0 %v91, 24
    %v1618 = vpop.permute.xlu0 %1617
    %1619 = vrot.lane.b32.xlu0 %v93, 24
    %v1620 = vpop.permute.xlu0 %1619
    %1621 = vrot.lane.b32.xlu0 %v94, 24
    %v1622 = vpop.permute.xlu0 %1621
    %1623 = vrot.lane.b32.xlu0 %v96, 24
    %v1624 = vpop.permute.xlu0 %1623
    %1625 = vrot.lane.b32.xlu0 %v97, 24
    %v1626 = vpop.permute.xlu0 %1625
    %1627 = vrot.lane.b32.xlu0 %v99, 24
    %v1628 = vpop.permute.xlu0 %1627
    %1629 = vrot.lane.b32.xlu0 %v100, 24
    %v1630 = vpop.permute.xlu0 %1629
    %1631 = vrot.lane.b32.xlu0 %v102, 24
    %v1632 = vpop.permute.xlu0 %1631
    %1633 = vrot.lane.b32.xlu0 %v103, 24
    %v1634 = vpop.permute.xlu0 %1633
    %1635 = vrot.lane.b32.xlu0 %v105, 24
    %v1636 = vpop.permute.xlu0 %1635
    %1637 = vrot.lane.b32.xlu0 %v106, 24
    %v1638 = vpop.permute.xlu0 %1637
    %1639 = vrot.lane.b32.xlu0 %v108, 24
    %v1640 = vpop.permute.xlu0 %1639
    %1641 = vrot.lane.b32.xlu0 %v109, 24
    %v1642 = vpop.permute.xlu0 %1641
    %1643 = vrot.lane.b32.xlu0 %v111, 24
    %v1644 = vpop.permute.xlu0 %1643
    %1645 = vrot.lane.b32.xlu0 %v112, 24
    %v1646 = vpop.permute.xlu0 %1645
    %1647 = vrot.lane.b32.xlu0 %v114, 24
    %v1648 = vpop.permute.xlu0 %1647
    %1649 = vrot.lane.b32.xlu0 %v115, 24
    %v1650 = vpop.permute.xlu0 %1649
    %1651 = vrot.lane.b32.xlu0 %v117, 24
    %v1652 = vpop.permute.xlu0 %1651
    %1653 = vrot.lane.b32.xlu0 %v118, 24
    %v1654 = vpop.permute.xlu0 %1653
    %1655 = vrot.lane.b32.xlu0 %v120, 24
    %v1656 = vpop.permute.xlu0 %1655
    %1657 = vrot.lane.b32.xlu0 %v121, 24
    %v1658 = vpop.permute.xlu0 %1657
    %v1725 = vrot.slane %v66, 1
    %v1726 = vrot.slane %v67, 1
    %v1727 = vsel %vm219, %v1725, %v1726
    %v1728 = vrot.slane %v68, 1
    %v1729 = vsel %vm219, %v1726, %v1728
    %v1730 = vrot.slane %v120, 1
    %v1731 = vrot.slane %v121, 1
    %v1732 = vsel %vm219, %v1730, %v1731
    %v1733 = vrot.slane %v122, 1
    %v1734 = vsel %vm219, %v1731, %v1733
    %1735 = vrot.lane.b32.xlu0 %v232, 28
    %v1736 = vpop.permute.xlu0 %1735
    %1737 = vrot.lane.b32.xlu0 %v234, 28
    %v1738 = vpop.permute.xlu0 %1737
    %1739 = vrot.lane.b32.xlu0 %v237, 28
    %v1740 = vpop.permute.xlu0 %1739
    %1741 = vrot.lane.b32.xlu0 %v239, 28
    %v1742 = vpop.permute.xlu0 %1741
    %1743 = vrot.lane.b32.xlu0 %v242, 28
    %v1744 = vpop.permute.xlu0 %1743
    %1745 = vrot.lane.b32.xlu0 %v244, 28
    %v1746 = vpop.permute.xlu0 %1745
    %1747 = vrot.lane.b32.xlu0 %v247, 28
    %v1748 = vpop.permute.xlu0 %1747
    %1749 = vrot.lane.b32.xlu0 %v249, 28
    %v1750 = vpop.permute.xlu0 %1749
    %1751 = vrot.lane.b32.xlu0 %v252, 28
    %v1752 = vpop.permute.xlu0 %1751
    %1753 = vrot.lane.b32.xlu0 %v254, 28
    %v1754 = vpop.permute.xlu0 %1753
    %1755 = vrot.lane.b32.xlu0 %v257, 28
    %v1756 = vpop.permute.xlu0 %1755
    %1757 = vrot.lane.b32.xlu0 %v259, 28
    %v1758 = vpop.permute.xlu0 %1757
    %1759 = vrot.lane.b32.xlu0 %v262, 28
    %v1760 = vpop.permute.xlu0 %1759
    %1761 = vrot.lane.b32.xlu0 %v264, 28
    %v1762 = vpop.permute.xlu0 %1761
    %1763 = vrot.lane.b32.xlu0 %v267, 28
    %v1764 = vpop.permute.xlu0 %1763
    %1765 = vrot.lane.b32.xlu0 %v269, 28
    %v1766 = vpop.permute.xlu0 %1765
    %1767 = vrot.lane.b32.xlu0 %v272, 28
    %v1768 = vpop.permute.xlu0 %1767
    %1769 = vrot.lane.b32.xlu0 %v274, 28
    %v1770 = vpop.permute.xlu0 %1769
    %1771 = vrot.lane.b32.xlu0 %v277, 28
    %v1772 = vpop.permute.xlu0 %1771
    %1773 = vrot.lane.b32.xlu0 %v279, 28
    %v1774 = vpop.permute.xlu0 %1773
    %1775 = vrot.lane.b32.xlu0 %v282, 28
    %v1776 = vpop.permute.xlu0 %1775
    %1777 = vrot.lane.b32.xlu0 %v284, 28
    %v1778 = vpop.permute.xlu0 %1777
    %1779 = vrot.lane.b32.xlu0 %v287, 28
    %v1780 = vpop.permute.xlu0 %1779
    %1781 = vrot.lane.b32.xlu0 %v289, 28
    %v1782 = vpop.permute.xlu0 %1781
    %1783 = vrot.lane.b32.xlu0 %v292, 28
    %v1784 = vpop.permute.xlu0 %1783
    %1785 = vrot.lane.b32.xlu0 %v294, 28
    %v1786 = vpop.permute.xlu0 %1785
    %1787 = vrot.lane.b32.xlu0 %v297, 28
    %v1788 = vpop.permute.xlu0 %1787
    %1789 = vrot.lane.b32.xlu0 %v299, 28
    %v1790 = vpop.permute.xlu0 %1789
    %1791 = vrot.lane.b32.xlu0 %v1125, 28
    %v1792 = vpop.permute.xlu0 %1791
    %1793 = vrot.lane.b32.xlu0 %v1127, 28
    %v1794 = vpop.permute.xlu0 %1793
    %1795 = vrot.lane.b32.xlu0 %v1727, 28
    %v1796 = vpop.permute.xlu0 %1795
    %1797 = vrot.lane.b32.xlu0 %v1729, 28
    %v1798 = vpop.permute.xlu0 %1797
    %1799 = vrot.lane.b32.xlu0 %v312, 28
    %v1800 = vpop.permute.xlu0 %1799
    %1801 = vrot.lane.b32.xlu0 %v314, 28
    %v1802 = vpop.permute.xlu0 %1801
    %1803 = vrot.lane.b32.xlu0 %v317, 28
    %v1804 = vpop.permute.xlu0 %1803
    %1805 = vrot.lane.b32.xlu0 %v319, 28
    %v1806 = vpop.permute.xlu0 %1805
    %1807 = vrot.lane.b32.xlu0 %v322, 28
    %v1808 = vpop.permute.xlu0 %1807
    %1809 = vrot.lane.b32.xlu0 %v324, 28
    %v1810 = vpop.permute.xlu0 %1809
    %1811 = vrot.lane.b32.xlu0 %v327, 28
    %v1812 = vpop.permute.xlu0 %1811
    %1813 = vrot.lane.b32.xlu0 %v329, 28
    %v1814 = vpop.permute.xlu0 %1813
    %1815 = vrot.lane.b32.xlu0 %v332, 28
    %v1816 = vpop.permute.xlu0 %1815
    %1817 = vrot.lane.b32.xlu0 %v334, 28
    %v1818 = vpop.permute.xlu0 %1817
    %1819 = vrot.lane.b32.xlu0 %v337, 28
    %v1820 = vpop.permute.xlu0 %1819
    %1821 = vrot.lane.b32.xlu0 %v339, 28
    %v1822 = vpop.permute.xlu0 %1821
    %1823 = vrot.lane.b32.xlu0 %v342, 28
    %v1824 = vpop.permute.xlu0 %1823
    %1825 = vrot.lane.b32.xlu0 %v344, 28
    %v1826 = vpop.permute.xlu0 %1825
    %1827 = vrot.lane.b32.xlu0 %v347, 28
    %v1828 = vpop.permute.xlu0 %1827
    %1829 = vrot.lane.b32.xlu0 %v349, 28
    %v1830 = vpop.permute.xlu0 %1829
    %1831 = vrot.lane.b32.xlu0 %v352, 28
    %v1832 = vpop.permute.xlu0 %1831
    %1833 = vrot.lane.b32.xlu0 %v354, 28
    %v1834 = vpop.permute.xlu0 %1833
    %1835 = vrot.lane.b32.xlu0 %v357, 28
    %v1836 = vpop.permute.xlu0 %1835
    %1837 = vrot.lane.b32.xlu0 %v359, 28
    %v1838 = vpop.permute.xlu0 %1837
    %1839 = vrot.lane.b32.xlu0 %v362, 28
    %v1840 = vpop.permute.xlu0 %1839
    %1841 = vrot.lane.b32.xlu0 %v364, 28
    %v1842 = vpop.permute.xlu0 %1841
    %1843 = vrot.lane.b32.xlu0 %v367, 28
    %v1844 = vpop.permute.xlu0 %1843
    %1845 = vrot.lane.b32.xlu0 %v369, 28
    %v1846 = vpop.permute.xlu0 %1845
    %1847 = vrot.lane.b32.xlu0 %v372, 28
    %v1848 = vpop.permute.xlu0 %1847
    %1849 = vrot.lane.b32.xlu0 %v374, 28
    %v1850 = vpop.permute.xlu0 %1849
    %1851 = vrot.lane.b32.xlu0 %v377, 28
    %v1852 = vpop.permute.xlu0 %1851
    %1853 = vrot.lane.b32.xlu0 %v379, 28
    %v1854 = vpop.permute.xlu0 %1853
    %1855 = vrot.lane.b32.xlu0 %v1130, 28
    %v1856 = vpop.permute.xlu0 %1855
    %1857 = vrot.lane.b32.xlu0 %v1132, 28
    %v1858 = vpop.permute.xlu0 %1857
    %1859 = vrot.lane.b32.xlu0 %v1732, 28
    %v1860 = vpop.permute.xlu0 %1859
    %1861 = vrot.lane.b32.xlu0 %v1734, 28
    %v1862 = vpop.permute.xlu0 %1861
    %v1927 = vrot.slane %v66, 2
    %v1928 = vrot.slane %v67, 2
    %v1929 = vsel %vm572, %v1927, %v1928
    %v1930 = vrot.slane %v68, 2
    %v1931 = vsel %vm572, %v1928, %v1930
    %v1932 = vrot.slane %v120, 2
    %v1933 = vrot.slane %v121, 2
    %v1934 = vsel %vm572, %v1932, %v1933
    %v1935 = vrot.slane %v122, 2
    %v1936 = vsel %vm572, %v1933, %v1935
    %1937 = vrot.lane.b32.xlu0 %v585, 32
    %v1938 = vpop.permute.xlu0 %1937
    %1939 = vrot.lane.b32.xlu0 %v587, 32
    %v1940 = vpop.permute.xlu0 %1939
    %1941 = vrot.lane.b32.xlu0 %v590, 32
    %v1942 = vpop.permute.xlu0 %1941
    %1943 = vrot.lane.b32.xlu0 %v592, 32
    %v1944 = vpop.permute.xlu0 %1943
    %1945 = vrot.lane.b32.xlu0 %v595, 32
    %v1946 = vpop.permute.xlu0 %1945
    %1947 = vrot.lane.b32.xlu0 %v597, 32
    %v1948 = vpop.permute.xlu0 %1947
    %1949 = vrot.lane.b32.xlu0 %v600, 32
    %v1950 = vpop.permute.xlu0 %1949
    %1951 = vrot.lane.b32.xlu0 %v602, 32
    %v1952 = vpop.permute.xlu0 %1951
    %1953 = vrot.lane.b32.xlu0 %v605, 32
    %v1954 = vpop.permute.xlu0 %1953
    %1955 = vrot.lane.b32.xlu0 %v607, 32
    %v1956 = vpop.permute.xlu0 %1955
    %1957 = vrot.lane.b32.xlu0 %v610, 32
    %v1958 = vpop.permute.xlu0 %1957
    %1959 = vrot.lane.b32.xlu0 %v612, 32
    %v1960 = vpop.permute.xlu0 %1959
    %1961 = vrot.lane.b32.xlu0 %v615, 32
    %v1962 = vpop.permute.xlu0 %1961
    %1963 = vrot.lane.b32.xlu0 %v617, 32
    %v1964 = vpop.permute.xlu0 %1963
    %1965 = vrot.lane.b32.xlu0 %v620, 32
    %v1966 = vpop.permute.xlu0 %1965
    %1967 = vrot.lane.b32.xlu0 %v622, 32
    %v1968 = vpop.permute.xlu0 %1967
    %1969 = vrot.lane.b32.xlu0 %v625, 32
    %v1970 = vpop.permute.xlu0 %1969
    %1971 = vrot.lane.b32.xlu0 %v627, 32
    %v1972 = vpop.permute.xlu0 %1971
    %1973 = vrot.lane.b32.xlu0 %v630, 32
    %v1974 = vpop.permute.xlu0 %1973
    %1975 = vrot.lane.b32.xlu0 %v632, 32
    %v1976 = vpop.permute.xlu0 %1975
    %1977 = vrot.lane.b32.xlu0 %v635, 32
    %v1978 = vpop.permute.xlu0 %1977
    %1979 = vrot.lane.b32.xlu0 %v637, 32
    %v1980 = vpop.permute.xlu0 %1979
    %1981 = vrot.lane.b32.xlu0 %v640, 32
    %v1982 = vpop.permute.xlu0 %1981
    %1983 = vrot.lane.b32.xlu0 %v642, 32
    %v1984 = vpop.permute.xlu0 %1983
    %1985 = vrot.lane.b32.xlu0 %v645, 32
    %v1986 = vpop.permute.xlu0 %1985
    %1987 = vrot.lane.b32.xlu0 %v647, 32
    %v1988 = vpop.permute.xlu0 %1987
    %1989 = vrot.lane.b32.xlu0 %v650, 32
    %v1990 = vpop.permute.xlu0 %1989
    %1991 = vrot.lane.b32.xlu0 %v652, 32
    %v1992 = vpop.permute.xlu0 %1991
    %1993 = vrot.lane.b32.xlu0 %v1327, 32
    %v1994 = vpop.permute.xlu0 %1993
    %1995 = vrot.lane.b32.xlu0 %v1329, 32
    %v1996 = vpop.permute.xlu0 %1995
    %1997 = vrot.lane.b32.xlu0 %v1929, 32
    %v1998 = vpop.permute.xlu0 %1997
    %1999 = vrot.lane.b32.xlu0 %v1931, 32
    %v2000 = vpop.permute.xlu0 %1999
    %2001 = vrot.lane.b32.xlu0 %v665, 32
    %v2002 = vpop.permute.xlu0 %2001
    %2003 = vrot.lane.b32.xlu0 %v667, 32
    %v2004 = vpop.permute.xlu0 %2003
    %2005 = vrot.lane.b32.xlu0 %v670, 32
    %v2006 = vpop.permute.xlu0 %2005
    %2007 = vrot.lane.b32.xlu0 %v672, 32
    %v2008 = vpop.permute.xlu0 %2007
    %2009 = vrot.lane.b32.xlu0 %v675, 32
    %v2010 = vpop.permute.xlu0 %2009
    %2011 = vrot.lane.b32.xlu0 %v677, 32
    %v2012 = vpop.permute.xlu0 %2011
    %2013 = vrot.lane.b32.xlu0 %v680, 32
    %v2014 = vpop.permute.xlu0 %2013
    %2015 = vrot.lane.b32.xlu0 %v682, 32
    %v2016 = vpop.permute.xlu0 %2015
    %2017 = vrot.lane.b32.xlu0 %v685, 32
    %v2018 = vpop.permute.xlu0 %2017
    %2019 = vrot.lane.b32.xlu0 %v687, 32
    %v2020 = vpop.permute.xlu0 %2019
    %2021 = vrot.lane.b32.xlu0 %v690, 32
    %v2022 = vpop.permute.xlu0 %2021
    %2023 = vrot.lane.b32.xlu0 %v692, 32
    %v2024 = vpop.permute.xlu0 %2023
    %2025 = vrot.lane.b32.xlu0 %v695, 32
    %v2026 = vpop.permute.xlu0 %2025
    %2027 = vrot.lane.b32.xlu0 %v697, 32
    %v2028 = vpop.permute.xlu0 %2027
    %2029 = vrot.lane.b32.xlu0 %v700, 32
    %v2030 = vpop.permute.xlu0 %2029
    %2031 = vrot.lane.b32.xlu0 %v702, 32
    %v2032 = vpop.permute.xlu0 %2031
    %2033 = vrot.lane.b32.xlu0 %v705, 32
    %v2034 = vpop.permute.xlu0 %2033
    %2035 = vrot.lane.b32.xlu0 %v707, 32
    %v2036 = vpop.permute.xlu0 %2035
    %2037 = vrot.lane.b32.xlu0 %v710, 32
    %v2038 = vpop.permute.xlu0 %2037
    %2039 = vrot.lane.b32.xlu0 %v712, 32
    %v2040 = vpop.permute.xlu0 %2039
    %2041 = vrot.lane.b32.xlu0 %v715, 32
    %v2042 = vpop.permute.xlu0 %2041
    %2043 = vrot.lane.b32.xlu0 %v717, 32
    %v2044 = vpop.permute.xlu0 %2043
    %2045 = vrot.lane.b32.xlu0 %v720, 32
    %v2046 = vpop.permute.xlu0 %2045
    %2047 = vrot.lane.b32.xlu0 %v722, 32
    %v2048 = vpop.permute.xlu0 %2047
    %2049 = vrot.lane.b32.xlu0 %v725, 32
    %v2050 = vpop.permute.xlu0 %2049
    %2051 = vrot.lane.b32.xlu0 %v727, 32
    %v2052 = vpop.permute.xlu0 %2051
    %2053 = vrot.lane.b32.xlu0 %v730, 32
    %v2054 = vpop.permute.xlu0 %2053
    %2055 = vrot.lane.b32.xlu0 %v732, 32
    %v2056 = vpop.permute.xlu0 %2055
    %2057 = vrot.lane.b32.xlu0 %v1332, 32
    %v2058 = vpop.permute.xlu0 %2057
    %2059 = vrot.lane.b32.xlu0 %v1334, 32
    %v2060 = vpop.permute.xlu0 %2059
    %2061 = vrot.lane.b32.xlu0 %v1934, 32
    %v2062 = vpop.permute.xlu0 %2061
    %2063 = vrot.lane.b32.xlu0 %v1936, 32
    %v2064 = vpop.permute.xlu0 %2063
    %vm2129 = vcmask 31744
    %v2130 = vsel %vm2129, %v15, %v381
    %v2131 = vsel %vm2129, %v16, %v383
    %v2132 = vsel %vm2129, %v18, %v385
    %v2133 = vsel %vm2129, %v19, %v387
    %v2134 = vsel %vm2129, %v21, %v389
    %v2135 = vsel %vm2129, %v22, %v391
    %v2136 = vsel %vm2129, %v24, %v393
    %v2137 = vsel %vm2129, %v25, %v395
    %v2138 = vsel %vm2129, %v27, %v397
    %v2139 = vsel %vm2129, %v28, %v399
    %v2140 = vsel %vm2129, %v30, %v401
    %v2141 = vsel %vm2129, %v31, %v403
    %v2142 = vsel %vm2129, %v33, %v405
    %v2143 = vsel %vm2129, %v34, %v407
    %v2144 = vsel %vm2129, %v36, %v409
    %v2145 = vsel %vm2129, %v37, %v411
    %v2146 = vsel %vm2129, %v39, %v413
    %v2147 = vsel %vm2129, %v40, %v415
    %v2148 = vsel %vm2129, %v42, %v417
    %v2149 = vsel %vm2129, %v43, %v419
    %v2150 = vsel %vm2129, %v45, %v421
    %v2151 = vsel %vm2129, %v46, %v423
    %v2152 = vsel %vm2129, %v48, %v425
    %v2153 = vsel %vm2129, %v49, %v427
    %v2154 = vsel %vm2129, %v51, %v429
    %v2155 = vsel %vm2129, %v52, %v431
    %v2156 = vsel %vm2129, %v54, %v433
    %v2157 = vsel %vm2129, %v55, %v435
    %v2158 = vsel %vm2129, %v57, %v437
    %v2159 = vsel %vm2129, %v58, %v439
    %v2160 = vsel %vm2129, %v60, %v441
    %v2161 = vsel %vm2129, %v61, %v443
    %v2162 = vsel %vm2129, %v69, %v445
    %v2163 = vsel %vm2129, %v70, %v447
    %v2164 = vsel %vm2129, %v72, %v449
    %v2165 = vsel %vm2129, %v73, %v451
    %v2166 = vsel %vm2129, %v75, %v453
    %v2167 = vsel %vm2129, %v76, %v455
    %v2168 = vsel %vm2129, %v78, %v457
    %v2169 = vsel %vm2129, %v79, %v459
    %v2170 = vsel %vm2129, %v81, %v461
    %v2171 = vsel %vm2129, %v82, %v463
    %v2172 = vsel %vm2129, %v84, %v465
    %v2173 = vsel %vm2129, %v85, %v467
    %v2174 = vsel %vm2129, %v87, %v469
    %v2175 = vsel %vm2129, %v88, %v471
    %v2176 = vsel %vm2129, %v90, %v473
    %v2177 = vsel %vm2129, %v91, %v475
    %v2178 = vsel %vm2129, %v93, %v477
    %v2179 = vsel %vm2129, %v94, %v479
    %v2180 = vsel %vm2129, %v96, %v481
    %v2181 = vsel %vm2129, %v97, %v483
    %v2182 = vsel %vm2129, %v99, %v485
    %v2183 = vsel %vm2129, %v100, %v487
    %v2184 = vsel %vm2129, %v102, %v489
    %v2185 = vsel %vm2129, %v103, %v491
    %v2186 = vsel %vm2129, %v105, %v493
    %v2187 = vsel %vm2129, %v106, %v495
    %v2188 = vsel %vm2129, %v108, %v497
    %v2189 = vsel %vm2129, %v109, %v499
    %v2190 = vsel %vm2129, %v111, %v501
    %v2191 = vsel %vm2129, %v112, %v503
    %v2192 = vsel %vm2129, %v114, %v505
    %v2193 = vsel %vm2129, %v115, %v507
    %vm2194 = vcmask 64512
    %v2195 = vsel %vm2194, %v2130, %v734
    %v2196 = vsel %vm2194, %v2131, %v736
    %v2197 = vsel %vm2194, %v2132, %v738
    %v2198 = vsel %vm2194, %v2133, %v740
    %v2199 = vsel %vm2194, %v2134, %v742
    %v2200 = vsel %vm2194, %v2135, %v744
    %v2201 = vsel %vm2194, %v2136, %v746
    %v2202 = vsel %vm2194, %v2137, %v748
    %v2203 = vsel %vm2194, %v2138, %v750
    %v2204 = vsel %vm2194, %v2139, %v752
    %v2205 = vsel %vm2194, %v2140, %v754
    %v2206 = vsel %vm2194, %v2141, %v756
    %v2207 = vsel %vm2194, %v2142, %v758
    %v2208 = vsel %vm2194, %v2143, %v760
    %v2209 = vsel %vm2194, %v2144, %v762
    %v2210 = vsel %vm2194, %v2145, %v764
    %v2211 = vsel %vm2194, %v2146, %v766
    %v2212 = vsel %vm2194, %v2147, %v768
    %v2213 = vsel %vm2194, %v2148, %v770
    %v2214 = vsel %vm2194, %v2149, %v772
    %v2215 = vsel %vm2194, %v2150, %v774
    %v2216 = vsel %vm2194, %v2151, %v776
    %v2217 = vsel %vm2194, %v2152, %v778
    %v2218 = vsel %vm2194, %v2153, %v780
    %v2219 = vsel %vm2194, %v2154, %v782
    %v2220 = vsel %vm2194, %v2155, %v784
    %v2221 = vsel %vm2194, %v2156, %v786
    %v2222 = vsel %vm2194, %v2157, %v788
    %v2223 = vsel %vm2194, %v2158, %v790
    %v2224 = vsel %vm2194, %v2159, %v792
    %v2225 = vsel %vm2194, %v2160, %v794
    %v2226 = vsel %vm2194, %v2161, %v796
    %v2227 = vsel %vm2194, %v2162, %v798
    %v2228 = vsel %vm2194, %v2163, %v800
    %v2229 = vsel %vm2194, %v2164, %v802
    %v2230 = vsel %vm2194, %v2165, %v804
    %v2231 = vsel %vm2194, %v2166, %v806
    %v2232 = vsel %vm2194, %v2167, %v808
    %v2233 = vsel %vm2194, %v2168, %v810
    %v2234 = vsel %vm2194, %v2169, %v812
    %v2235 = vsel %vm2194, %v2170, %v814
    %v2236 = vsel %vm2194, %v2171, %v816
    %v2237 = vsel %vm2194, %v2172, %v818
    %v2238 = vsel %vm2194, %v2173, %v820
    %v2239 = vsel %vm2194, %v2174, %v822
    %v2240 = vsel %vm2194, %v2175, %v824
    %v2241 = vsel %vm2194, %v2176, %v826
    %v2242 = vsel %vm2194, %v2177, %v828
    %v2243 = vsel %vm2194, %v2178, %v830
    %v2244 = vsel %vm2194, %v2179, %v832
    %v2245 = vsel %vm2194, %v2180, %v834
    %v2246 = vsel %vm2194, %v2181, %v836
    %v2247 = vsel %vm2194, %v2182, %v838
    %v2248 = vsel %vm2194, %v2183, %v840
    %v2249 = vsel %vm2194, %v2184, %v842
    %v2250 = vsel %vm2194, %v2185, %v844
    %v2251 = vsel %vm2194, %v2186, %v846
    %v2252 = vsel %vm2194, %v2187, %v848
    %v2253 = vsel %vm2194, %v2188, %v850
    %v2254 = vsel %vm2194, %v2189, %v852
    %v2255 = vsel %vm2194, %v2190, %v854
    %v2256 = vsel %vm2194, %v2191, %v856
    %v2257 = vsel %vm2194, %v2192, %v858
    %v2258 = vsel %vm2194, %v2193, %v860
    %vm2259 = vcmask 97280
    %v2260 = vsel %vm2259, %v2195, %v930
    %v2261 = vsel %vm2259, %v2196, %v932
    %v2262 = vsel %vm2259, %v2197, %v934
    %v2263 = vsel %vm2259, %v2198, %v936
    %v2264 = vsel %vm2259, %v2199, %v938
    %v2265 = vsel %vm2259, %v2200, %v940
    %v2266 = vsel %vm2259, %v2201, %v942
    %v2267 = vsel %vm2259, %v2202, %v944
    %v2268 = vsel %vm2259, %v2203, %v946
    %v2269 = vsel %vm2259, %v2204, %v948
    %v2270 = vsel %vm2259, %v2205, %v950
    %v2271 = vsel %vm2259, %v2206, %v952
    %v2272 = vsel %vm2259, %v2207, %v954
    %v2273 = vsel %vm2259, %v2208, %v956
    %v2274 = vsel %vm2259, %v2209, %v958
    %v2275 = vsel %vm2259, %v2210, %v960
    %v2276 = vsel %vm2259, %v2211, %v962
    %v2277 = vsel %vm2259, %v2212, %v964
    %v2278 = vsel %vm2259, %v2213, %v966
    %v2279 = vsel %vm2259, %v2214, %v968
    %v2280 = vsel %vm2259, %v2215, %v970
    %v2281 = vsel %vm2259, %v2216, %v972
    %v2282 = vsel %vm2259, %v2217, %v974
    %v2283 = vsel %vm2259, %v2218, %v976
    %v2284 = vsel %vm2259, %v2219, %v978
    %v2285 = vsel %vm2259, %v2220, %v980
    %v2286 = vsel %vm2259, %v2221, %v982
    %v2287 = vsel %vm2259, %v2222, %v984
    %v2288 = vsel %vm2259, %v2223, %v986
    %v2289 = vsel %vm2259, %v2224, %v988
    %v2290 = vsel %vm2259, %v2225, %v990
    %v2291 = vsel %vm2259, %v2226, %v992
    %v2292 = vsel %vm2259, %v2227, %v994
    %v2293 = vsel %vm2259, %v2228, %v996
    %v2294 = vsel %vm2259, %v2229, %v998
    %v2295 = vsel %vm2259, %v2230, %v1000
    %v2296 = vsel %vm2259, %v2231, %v1002
    %v2297 = vsel %vm2259, %v2232, %v1004
    %v2298 = vsel %vm2259, %v2233, %v1006
    %v2299 = vsel %vm2259, %v2234, %v1008
    %v2300 = vsel %vm2259, %v2235, %v1010
    %v2301 = vsel %vm2259, %v2236, %v1012
    %v2302 = vsel %vm2259, %v2237, %v1014
    %v2303 = vsel %vm2259, %v2238, %v1016
    %v2304 = vsel %vm2259, %v2239, %v1018
    %v2305 = vsel %vm2259, %v2240, %v1020
    %v2306 = vsel %vm2259, %v2241, %v1022
    %v2307 = vsel %vm2259, %v2242, %v1024
    %v2308 = vsel %vm2259, %v2243, %v1026
    %v2309 = vsel %vm2259, %v2244, %v1028
    %v2310 = vsel %vm2259, %v2245, %v1030
    %v2311 = vsel %vm2259, %v2246, %v1032
    %v2312 = vsel %vm2259, %v2247, %v1034
    %v2313 = vsel %vm2259, %v2248, %v1036
    %v2314 = vsel %vm2259, %v2249, %v1038
    %v2315 = vsel %vm2259, %v2250, %v1040
    %v2316 = vsel %vm2259, %v2251, %v1042
    %v2317 = vsel %vm2259, %v2252, %v1044
    %v2318 = vsel %vm2259, %v2253, %v1046
    %v2319 = vsel %vm2259, %v2254, %v1048
    %v2320 = vsel %vm2259, %v2255, %v1050
    %v2321 = vsel %vm2259, %v2256, %v1052
    %v2322 = vsel %vm2259, %v2257, %v1054
    %v2323 = vsel %vm2259, %v2258, %v1056
    %vm2324 = vcmask 130048
    %v2325 = vsel %vm2324, %v2260, %v1134
    %v2326 = vsel %vm2324, %v2261, %v1136
    %v2327 = vsel %vm2324, %v2262, %v1138
    %v2328 = vsel %vm2324, %v2263, %v1140
    %v2329 = vsel %vm2324, %v2264, %v1142
    %v2330 = vsel %vm2324, %v2265, %v1144
    %v2331 = vsel %vm2324, %v2266, %v1146
    %v2332 = vsel %vm2324, %v2267, %v1148
    %v2333 = vsel %vm2324, %v2268, %v1150
    %v2334 = vsel %vm2324, %v2269, %v1152
    %v2335 = vsel %vm2324, %v2270, %v1154
    %v2336 = vsel %vm2324, %v2271, %v1156
    %v2337 = vsel %vm2324, %v2272, %v1158
    %v2338 = vsel %vm2324, %v2273, %v1160
    %v2339 = vsel %vm2324, %v2274, %v1162
    %v2340 = vsel %vm2324, %v2275, %v1164
    %v2341 = vsel %vm2324, %v2276, %v1166
    %v2342 = vsel %vm2324, %v2277, %v1168
    %v2343 = vsel %vm2324, %v2278, %v1170
    %v2344 = vsel %vm2324, %v2279, %v1172
    %v2345 = vsel %vm2324, %v2280, %v1174
    %v2346 = vsel %vm2324, %v2281, %v1176
    %v2347 = vsel %vm2324, %v2282, %v1178
    %v2348 = vsel %vm2324, %v2283, %v1180
    %v2349 = vsel %vm2324, %v2284, %v1182
    %v2350 = vsel %vm2324, %v2285, %v1184
    %v2351 = vsel %vm2324, %v2286, %v1186
    %v2352 = vsel %vm2324, %v2287, %v1188
    %v2353 = vsel %vm2324, %v2288, %v1190
    %v2354 = vsel %vm2324, %v2289, %v1192
    %v2355 = vsel %vm2324, %v2290, %v1194
    %v2356 = vsel %vm2324, %v2291, %v1196
    %v2357 = vsel %vm2324, %v2292, %v1198
    %v2358 = vsel %vm2324, %v2293, %v1200
    %v2359 = vsel %vm2324, %v2294, %v1202
    %v2360 = vsel %vm2324, %v2295, %v1204
    %v2361 = vsel %vm2324, %v2296, %v1206
    %v2362 = vsel %vm2324, %v2297, %v1208
    %v2363 = vsel %vm2324, %v2298, %v1210
    %v2364 = vsel %vm2324, %v2299, %v1212
    %v2365 = vsel %vm2324, %v2300, %v1214
    %v2366 = vsel %vm2324, %v2301, %v1216
    %v2367 = vsel %vm2324, %v2302, %v1218
    %v2368 = vsel %vm2324, %v2303, %v1220
    %v2369 = vsel %vm2324, %v2304, %v1222
    %v2370 = vsel %vm2324, %v2305, %v1224
    %v2371 = vsel %vm2324, %v2306, %v1226
    %v2372 = vsel %vm2324, %v2307, %v1228
    %v2373 = vsel %vm2324, %v2308, %v1230
    %v2374 = vsel %vm2324, %v2309, %v1232
    %v2375 = vsel %vm2324, %v2310, %v1234
    %v2376 = vsel %vm2324, %v2311, %v1236
    %v2377 = vsel %vm2324, %v2312, %v1238
    %v2378 = vsel %vm2324, %v2313, %v1240
    %v2379 = vsel %vm2324, %v2314, %v1242
    %v2380 = vsel %vm2324, %v2315, %v1244
    %v2381 = vsel %vm2324, %v2316, %v1246
    %v2382 = vsel %vm2324, %v2317, %v1248
    %v2383 = vsel %vm2324, %v2318, %v1250
    %v2384 = vsel %vm2324, %v2319, %v1252
    %v2385 = vsel %vm2324, %v2320, %v1254
    %v2386 = vsel %vm2324, %v2321, %v1256
    %v2387 = vsel %vm2324, %v2322, %v1258
    %v2388 = vsel %vm2324, %v2323, %v1260
    %vm2389 = vcmask 162816
    %v2390 = vsel %vm2389, %v2325, %v1336
    %v2391 = vsel %vm2389, %v2326, %v1338
    %v2392 = vsel %vm2389, %v2327, %v1340
    %v2393 = vsel %vm2389, %v2328, %v1342
    %v2394 = vsel %vm2389, %v2329, %v1344
    %v2395 = vsel %vm2389, %v2330, %v1346
    %v2396 = vsel %vm2389, %v2331, %v1348
    %v2397 = vsel %vm2389, %v2332, %v1350
    %v2398 = vsel %vm2389, %v2333, %v1352
    %v2399 = vsel %vm2389, %v2334, %v1354
    %v2400 = vsel %vm2389, %v2335, %v1356
    %v2401 = vsel %vm2389, %v2336, %v1358
    %v2402 = vsel %vm2389, %v2337, %v1360
    %v2403 = vsel %vm2389, %v2338, %v1362
    %v2404 = vsel %vm2389, %v2339, %v1364
    %v2405 = vsel %vm2389, %v2340, %v1366
    %v2406 = vsel %vm2389, %v2341, %v1368
    %v2407 = vsel %vm2389, %v2342, %v1370
    %v2408 = vsel %vm2389, %v2343, %v1372
    %v2409 = vsel %vm2389, %v2344, %v1374
    %v2410 = vsel %vm2389, %v2345, %v1376
    %v2411 = vsel %vm2389, %v2346, %v1378
    %v2412 = vsel %vm2389, %v2347, %v1380
    %v2413 = vsel %vm2389, %v2348, %v1382
    %v2414 = vsel %vm2389, %v2349, %v1384
    %v2415 = vsel %vm2389, %v2350, %v1386
    %v2416 = vsel %vm2389, %v2351, %v1388
    %v2417 = vsel %vm2389, %v2352, %v1390
    %v2418 = vsel %vm2389, %v2353, %v1392
    %v2419 = vsel %vm2389, %v2354, %v1394
    %v2420 = vsel %vm2389, %v2355, %v1396
    %v2421 = vsel %vm2389, %v2356, %v1398
    %v2422 = vsel %vm2389, %v2357, %v1400
    %v2423 = vsel %vm2389, %v2358, %v1402
    %v2424 = vsel %vm2389, %v2359, %v1404
    %v2425 = vsel %vm2389, %v2360, %v1406
    %v2426 = vsel %vm2389, %v2361, %v1408
    %v2427 = vsel %vm2389, %v2362, %v1410
    %v2428 = vsel %vm2389, %v2363, %v1412
    %v2429 = vsel %vm2389, %v2364, %v1414
    %v2430 = vsel %vm2389, %v2365, %v1416
    %v2431 = vsel %vm2389, %v2366, %v1418
    %v2432 = vsel %vm2389, %v2367, %v1420
    %v2433 = vsel %vm2389, %v2368, %v1422
    %v2434 = vsel %vm2389, %v2369, %v1424
    %v2435 = vsel %vm2389, %v2370, %v1426
    %v2436 = vsel %vm2389, %v2371, %v1428
    %v2437 = vsel %vm2389, %v2372, %v1430
    %v2438 = vsel %vm2389, %v2373, %v1432
    %v2439 = vsel %vm2389, %v2374, %v1434
    %v2440 = vsel %vm2389, %v2375, %v1436
    %v2441 = vsel %vm2389, %v2376, %v1438
    %v2442 = vsel %vm2389, %v2377, %v1440
    %v2443 = vsel %vm2389, %v2378, %v1442
    %v2444 = vsel %vm2389, %v2379, %v1444
    %v2445 = vsel %vm2389, %v2380, %v1446
    %v2446 = vsel %vm2389, %v2381, %v1448
    %v2447 = vsel %vm2389, %v2382, %v1450
    %v2448 = vsel %vm2389, %v2383, %v1452
    %v2449 = vsel %vm2389, %v2384, %v1454
    %v2450 = vsel %vm2389, %v2385, %v1456
    %v2451 = vsel %vm2389, %v2386, %v1458
    %v2452 = vsel %vm2389, %v2387, %v1460
    %v2453 = vsel %vm2389, %v2388, %v1462
    %vm2454 = vcmask 195584
    %v2455 = vsel %vm2454, %v2390, %v1532
    %v2456 = vsel %vm2454, %v2391, %v1534
    %v2457 = vsel %vm2454, %v2392, %v1536
    %v2458 = vsel %vm2454, %v2393, %v1538
    %v2459 = vsel %vm2454, %v2394, %v1540
    %v2460 = vsel %vm2454, %v2395, %v1542
    %v2461 = vsel %vm2454, %v2396, %v1544
    %v2462 = vsel %vm2454, %v2397, %v1546
    %v2463 = vsel %vm2454, %v2398, %v1548
    %v2464 = vsel %vm2454, %v2399, %v1550
    %v2465 = vsel %vm2454, %v2400, %v1552
    %v2466 = vsel %vm2454, %v2401, %v1554
    %v2467 = vsel %vm2454, %v2402, %v1556
    %v2468 = vsel %vm2454, %v2403, %v1558
    %v2469 = vsel %vm2454, %v2404, %v1560
    %v2470 = vsel %vm2454, %v2405, %v1562
    %v2471 = vsel %vm2454, %v2406, %v1564
    %v2472 = vsel %vm2454, %v2407, %v1566
    %v2473 = vsel %vm2454, %v2408, %v1568
    %v2474 = vsel %vm2454, %v2409, %v1570
    %v2475 = vsel %vm2454, %v2410, %v1572
    %v2476 = vsel %vm2454, %v2411, %v1574
    %v2477 = vsel %vm2454, %v2412, %v1576
    %v2478 = vsel %vm2454, %v2413, %v1578
    %v2479 = vsel %vm2454, %v2414, %v1580
    %v2480 = vsel %vm2454, %v2415, %v1582
    %v2481 = vsel %vm2454, %v2416, %v1584
    %v2482 = vsel %vm2454, %v2417, %v1586
    %v2483 = vsel %vm2454, %v2418, %v1588
    %v2484 = vsel %vm2454, %v2419, %v1590
    %v2485 = vsel %vm2454, %v2420, %v1592
    %v2486 = vsel %vm2454, %v2421, %v1594
    %v2487 = vsel %vm2454, %v2422, %v1596
    %v2488 = vsel %vm2454, %v2423, %v1598
    %v2489 = vsel %vm2454, %v2424, %v1600
    %v2490 = vsel %vm2454, %v2425, %v1602
    %v2491 = vsel %vm2454, %v2426, %v1604
    %v2492 = vsel %vm2454, %v2427, %v1606
    %v2493 = vsel %vm2454, %v2428, %v1608
    %v2494 = vsel %vm2454, %v2429, %v1610
    %v2495 = vsel %vm2454, %v2430, %v1612
    %v2496 = vsel %vm2454, %v2431, %v1614
    %v2497 = vsel %vm2454, %v2432, %v1616
    %v2498 = vsel %vm2454, %v2433, %v1618
    %v2499 = vsel %vm2454, %v2434, %v1620
    %v2500 = vsel %vm2454, %v2435, %v1622
    %v2501 = vsel %vm2454, %v2436, %v1624
    %v2502 = vsel %vm2454, %v2437, %v1626
    %v2503 = vsel %vm2454, %v2438, %v1628
    %v2504 = vsel %vm2454, %v2439, %v1630
    %v2505 = vsel %vm2454, %v2440, %v1632
    %v2506 = vsel %vm2454, %v2441, %v1634
    %v2507 = vsel %vm2454, %v2442, %v1636
    %v2508 = vsel %vm2454, %v2443, %v1638
    %v2509 = vsel %vm2454, %v2444, %v1640
    %v2510 = vsel %vm2454, %v2445, %v1642
    %v2511 = vsel %vm2454, %v2446, %v1644
    %v2512 = vsel %vm2454, %v2447, %v1646
    %v2513 = vsel %vm2454, %v2448, %v1648
    %v2514 = vsel %vm2454, %v2449, %v1650
    %v2515 = vsel %vm2454, %v2450, %v1652
    %v2516 = vsel %vm2454, %v2451, %v1654
    %v2517 = vsel %vm2454, %v2452, %v1656
    %v2518 = vsel %vm2454, %v2453, %v1658
    %vm2519 = vcmask 228352
    %v2520 = vsel %vm2519, %v2455, %v1736
    %v2521 = vsel %vm2519, %v2456, %v1738
    %v2522 = vsel %vm2519, %v2457, %v1740
    %v2523 = vsel %vm2519, %v2458, %v1742
    %v2524 = vsel %vm2519, %v2459, %v1744
    %v2525 = vsel %vm2519, %v2460, %v1746
    %v2526 = vsel %vm2519, %v2461, %v1748
    %v2527 = vsel %vm2519, %v2462, %v1750
    %v2528 = vsel %vm2519, %v2463, %v1752
    %v2529 = vsel %vm2519, %v2464, %v1754
    %v2530 = vsel %vm2519, %v2465, %v1756
    %v2531 = vsel %vm2519, %v2466, %v1758
    %v2532 = vsel %vm2519, %v2467, %v1760
    %v2533 = vsel %vm2519, %v2468, %v1762
    %v2534 = vsel %vm2519, %v2469, %v1764
    %v2535 = vsel %vm2519, %v2470, %v1766
    %v2536 = vsel %vm2519, %v2471, %v1768
    %v2537 = vsel %vm2519, %v2472, %v1770
    %v2538 = vsel %vm2519, %v2473, %v1772
    %v2539 = vsel %vm2519, %v2474, %v1774
    %v2540 = vsel %vm2519, %v2475, %v1776
    %v2541 = vsel %vm2519, %v2476, %v1778
    %v2542 = vsel %vm2519, %v2477, %v1780
    %v2543 = vsel %vm2519, %v2478, %v1782
    %v2544 = vsel %vm2519, %v2479, %v1784
    %v2545 = vsel %vm2519, %v2480, %v1786
    %v2546 = vsel %vm2519, %v2481, %v1788
    %v2547 = vsel %vm2519, %v2482, %v1790
    %v2548 = vsel %vm2519, %v2483, %v1792
    %v2549 = vsel %vm2519, %v2484, %v1794
    %v2550 = vsel %vm2519, %v2485, %v1796
    %v2551 = vsel %vm2519, %v2486, %v1798
    %v2552 = vsel %vm2519, %v2487, %v1800
    %v2553 = vsel %vm2519, %v2488, %v1802
    %v2554 = vsel %vm2519, %v2489, %v1804
    %v2555 = vsel %vm2519, %v2490, %v1806
    %v2556 = vsel %vm2519, %v2491, %v1808
    %v2557 = vsel %vm2519, %v2492, %v1810
    %v2558 = vsel %vm2519, %v2493, %v1812
    %v2559 = vsel %vm2519, %v2494, %v1814
    %v2560 = vsel %vm2519, %v2495, %v1816
    %v2561 = vsel %vm2519, %v2496, %v1818
    %v2562 = vsel %vm2519, %v2497, %v1820
    %v2563 = vsel %vm2519, %v2498, %v1822
    %v2564 = vsel %vm2519, %v2499, %v1824
    %v2565 = vsel %vm2519, %v2500, %v1826
    %v2566 = vsel %vm2519, %v2501, %v1828
    %v2567 = vsel %vm2519, %v2502, %v1830
    %v2568 = vsel %vm2519, %v2503, %v1832
    %v2569 = vsel %vm2519, %v2504, %v1834
    %v2570 = vsel %vm2519, %v2505, %v1836
    %v2571 = vsel %vm2519, %v2506, %v1838
    %v2572 = vsel %vm2519, %v2507, %v1840
    %v2573 = vsel %vm2519, %v2508, %v1842
    %v2574 = vsel %vm2519, %v2509, %v1844
    %v2575 = vsel %vm2519, %v2510, %v1846
    %v2576 = vsel %vm2519, %v2511, %v1848
    %v2577 = vsel %vm2519, %v2512, %v1850
    %v2578 = vsel %vm2519, %v2513, %v1852
    %v2579 = vsel %vm2519, %v2514, %v1854
    %v2580 = vsel %vm2519, %v2515, %v1856
    %v2581 = vsel %vm2519, %v2516, %v1858
    %v2582 = vsel %vm2519, %v2517, %v1860
    %v2583 = vsel %vm2519, %v2518, %v1862
    %vm2584 = vcmask 261120
    %v2585 = vsel %vm2584, %v2520, %v1938
    %v2586 = vsel %vm2584, %v2521, %v1940
    %v2587 = vsel %vm2584, %v2522, %v1942
    %v2588 = vsel %vm2584, %v2523, %v1944
    %v2589 = vsel %vm2584, %v2524, %v1946
    %v2590 = vsel %vm2584, %v2525, %v1948
    %v2591 = vsel %vm2584, %v2526, %v1950
    %v2592 = vsel %vm2584, %v2527, %v1952
    %v2593 = vsel %vm2584, %v2528, %v1954
    %v2594 = vsel %vm2584, %v2529, %v1956
    %v2595 = vsel %vm2584, %v2530, %v1958
    %v2596 = vsel %vm2584, %v2531, %v1960
    %v2597 = vsel %vm2584, %v2532, %v1962
    %v2598 = vsel %vm2584, %v2533, %v1964
    %v2599 = vsel %vm2584, %v2534, %v1966
    %v2600 = vsel %vm2584, %v2535, %v1968
    %v2601 = vsel %vm2584, %v2536, %v1970
    %v2602 = vsel %vm2584, %v2537, %v1972
    %v2603 = vsel %vm2584, %v2538, %v1974
    %v2604 = vsel %vm2584, %v2539, %v1976
    %v2605 = vsel %vm2584, %v2540, %v1978
    %v2606 = vsel %vm2584, %v2541, %v1980
    %v2607 = vsel %vm2584, %v2542, %v1982
    %v2608 = vsel %vm2584, %v2543, %v1984
    %v2609 = vsel %vm2584, %v2544, %v1986
    %v2610 = vsel %vm2584, %v2545, %v1988
    %v2611 = vsel %vm2584, %v2546, %v1990
    %v2612 = vsel %vm2584, %v2547, %v1992
    %v2613 = vsel %vm2584, %v2548, %v1994
    %v2614 = vsel %vm2584, %v2549, %v1996
    %v2615 = vsel %vm2584, %v2550, %v1998
    %v2616 = vsel %vm2584, %v2551, %v2000
    %v2617 = vsel %vm2584, %v2552, %v2002
    %v2618 = vsel %vm2584, %v2553, %v2004
    %v2619 = vsel %vm2584, %v2554, %v2006
    %v2620 = vsel %vm2584, %v2555, %v2008
    %v2621 = vsel %vm2584, %v2556, %v2010
    %v2622 = vsel %vm2584, %v2557, %v2012
    %v2623 = vsel %vm2584, %v2558, %v2014
    %v2624 = vsel %vm2584, %v2559, %v2016
    %v2625 = vsel %vm2584, %v2560, %v2018
    %v2626 = vsel %vm2584, %v2561, %v2020
    %v2627 = vsel %vm2584, %v2562, %v2022
    %v2628 = vsel %vm2584, %v2563, %v2024
    %v2629 = vsel %vm2584, %v2564, %v2026
    %v2630 = vsel %vm2584, %v2565, %v2028
    %v2631 = vsel %vm2584, %v2566, %v2030
    %v2632 = vsel %vm2584, %v2567, %v2032
    %v2633 = vsel %vm2584, %v2568, %v2034
    %v2634 = vsel %vm2584, %v2569, %v2036
    %v2635 = vsel %vm2584, %v2570, %v2038
    %v2636 = vsel %vm2584, %v2571, %v2040
    %v2637 = vsel %vm2584, %v2572, %v2042
    %v2638 = vsel %vm2584, %v2573, %v2044
    %v2639 = vsel %vm2584, %v2574, %v2046
    %v2640 = vsel %vm2584, %v2575, %v2048
    %v2641 = vsel %vm2584, %v2576, %v2050
    %v2642 = vsel %vm2584, %v2577, %v2052
    %v2643 = vsel %vm2584, %v2578, %v2054
    %v2644 = vsel %vm2584, %v2579, %v2056
    %v2645 = vsel %vm2584, %v2580, %v2058
    %v2646 = vsel %vm2584, %v2581, %v2060
    %v2647 = vsel %vm2584, %v2582, %v2062
    %v2648 = vsel %vm2584, %v2583, %v2064
    %v2649 = vld [vmem:[%s1] sm:$0xff]
    %v2650 = vld [vmem:[%s1 + $0x8] sm:$0xff]
    %v2651 = vld [vmem:[%s1 + $0x10] sm:$0xff]
    %v2652 = vld [vmem:[%s1 + $0x18] sm:$0xff]
    %v2653 = vld [vmem:[%s1 + $0x20] sm:$0xf]
    %v2654 = vld [vmem:[%s2] sm:$0x1]
    %v2656 = vperm.slane %v2654, 0
    %vm2658 = vcmask 293888
    %v2660 = vsel %vm2658, %v2585, 0
    %v2663 = vsel %vm2658, %v2586, 0
    %v2666 = vsel %vm2658, %v2587, 0
    %v2669 = vsel %vm2658, %v2588, 0
    %v2672 = vsel %vm2658, %v2589, 0
    %v2675 = vsel %vm2658, %v2590, 0
    %v2678 = vsel %vm2658, %v2591, 0
    %v2681 = vsel %vm2658, %v2592, 0
    %v2684 = vsel %vm2658, %v2593, 0
    %v2687 = vsel %vm2658, %v2594, 0
    %v2690 = vsel %vm2658, %v2595, 0
    %v2693 = vsel %vm2658, %v2596, 0
    %v2696 = vsel %vm2658, %v2597, 0
    %v2699 = vsel %vm2658, %v2598, 0
    %v2702 = vsel %vm2658, %v2599, 0
    %v2705 = vsel %vm2658, %v2600, 0
    %v2708 = vsel %vm2658, %v2601, 0
    %v2711 = vsel %vm2658, %v2602, 0
    %v2714 = vsel %vm2658, %v2603, 0
    %v2717 = vsel %vm2658, %v2604, 0
    %v2720 = vsel %vm2658, %v2605, 0
    %v2723 = vsel %vm2658, %v2606, 0
    %v2726 = vsel %vm2658, %v2607, 0
    %v2729 = vsel %vm2658, %v2608, 0
    %v2732 = vsel %vm2658, %v2609, 0
    %v2735 = vsel %vm2658, %v2610, 0
    %v2738 = vsel %vm2658, %v2611, 0
    %v2741 = vsel %vm2658, %v2612, 0
    %v2744 = vsel %vm2658, %v2613, 0
    %v2747 = vsel %vm2658, %v2614, 0
    %v2750 = vsel %vm2658, %v2615, 0
    %v2753 = vsel %vm2658, %v2616, 0
    %v2756 = vsel %vm2658, %v2617, 0
    %v2759 = vsel %vm2658, %v2618, 0
    %v2762 = vsel %vm2658, %v2619, 0
    %v2765 = vsel %vm2658, %v2620, 0
    %v2768 = vsel %vm2658, %v2621, 0
    %v2771 = vsel %vm2658, %v2622, 0
    %v2774 = vsel %vm2658, %v2623, 0
    %v2777 = vsel %vm2658, %v2624, 0
    %v2780 = vsel %vm2658, %v2625, 0
    %v2783 = vsel %vm2658, %v2626, 0
    %v2786 = vsel %vm2658, %v2627, 0
    %v2789 = vsel %vm2658, %v2628, 0
    %v2792 = vsel %vm2658, %v2629, 0
    %v2795 = vsel %vm2658, %v2630, 0
    %v2798 = vsel %vm2658, %v2631, 0
    %v2801 = vsel %vm2658, %v2632, 0
    %v2804 = vsel %vm2658, %v2633, 0
    %v2807 = vsel %vm2658, %v2634, 0
    %v2810 = vsel %vm2658, %v2635, 0
    %v2813 = vsel %vm2658, %v2636, 0
    %v2816 = vsel %vm2658, %v2637, 0
    %v2819 = vsel %vm2658, %v2638, 0
    %v2822 = vsel %vm2658, %v2639, 0
    %v2825 = vsel %vm2658, %v2640, 0
    %v2828 = vsel %vm2658, %v2641, 0
    %v2831 = vsel %vm2658, %v2642, 0
    %v2834 = vsel %vm2658, %v2643, 0
    %v2837 = vsel %vm2658, %v2644, 0
    %v2840 = vsel %vm2658, %v2645, 0
    %v2843 = vsel %vm2658, %v2646, 0
    %v2846 = vsel %vm2658, %v2647, 0
    %v2849 = vsel %vm2658, %v2648, 0
    %vm2851 = vcmask 1043456
    %v2853 = vsel %vm2851, %v2653, 0
    %2855 = vmatpush.msra.mxu0 0.0
    %2856 = vmatpush.msra.mxu0 0.0
    %2857 = vmatpush.msra.mxu0 0.0
    %2858 = vmatpush.msra.mxu0 0.0
    %2859 = vmatpush.msra.mxu0 0.0
    %2860 = vmatpush.msra.mxu0 0.0
    %2861 = vmatpush.msra.mxu0 0.0
    %2862 = vmatpush.msra.mxu0 0.0
    %2863 = vmatpush.msra.mxu0 0.0
    %2864 = vmatpush.msra.mxu0 0.0
    %2865 = vmatpush.msra.mxu0 0.0
    %2866 = vmatpush.msra.mxu0 %v2853
    %2867 = vmatpush.msra.mxu0 %v2652
    %2868 = vmatpush.msra.mxu0 %v2651
    %2869 = vmatpush.msra.mxu0 %v2650
    %2870 = vmatpush.msra.mxu0 %v2649
    %2871 = vmatmul.f32.gmra.mxu0 %v2660
    %v2872 = vpop.f32.mrf.mxu0
    %v2873 = vadd.f32 %v2656, %v2872
    %2874 = vmatmul.f32.gmra.mxu0 %v2663
    %v2875 = vpop.f32.mrf.mxu0
    %v2876 = vadd.f32 %v2656, %v2875
    %2877 = vmatmul.f32.gmra.mxu0 %v2666
    %v2878 = vpop.f32.mrf.mxu0
    %v2879 = vadd.f32 %v2656, %v2878
    %2880 = vmatmul.f32.gmra.mxu0 %v2669
    %v2881 = vpop.f32.mrf.mxu0
    %v2882 = vadd.f32 %v2656, %v2881
    %2883 = vmatmul.f32.gmra.mxu0 %v2672
    %v2884 = vpop.f32.mrf.mxu0
    %v2885 = vadd.f32 %v2656, %v2884
    %2886 = vmatmul.f32.gmra.mxu0 %v2675
    %v2887 = vpop.f32.mrf.mxu0
    %v2888 = vadd.f32 %v2656, %v2887
    %2889 = vmatmul.f32.gmra.mxu0 %v2678
    %v2890 = vpop.f32.mrf.mxu0
    %v2891 = vadd.f32 %v2656, %v2890
    %2892 = vmatmul.f32.gmra.mxu0 %v2681
    %v2893 = vpop.f32.mrf.mxu0
    %v2894 = vadd.f32 %v2656, %v2893
    %2895 = vmatmul.f32.gmra.mxu0 %v2684
    %v2896 = vpop.f32.mrf.mxu0
    %v2897 = vadd.f32 %v2656, %v2896
    %2898 = vmatmul.f32.gmra.mxu0 %v2687
    %v2899 = vpop.f32.mrf.mxu0
    %v2900 = vadd.f32 %v2656, %v2899
    %2901 = vmatmul.f32.gmra.mxu0 %v2690
    %v2902 = vpop.f32.mrf.mxu0
    %v2903 = vadd.f32 %v2656, %v2902
    %2904 = vmatmul.f32.gmra.mxu0 %v2693
    %v2905 = vpop.f32.mrf.mxu0
    %v2906 = vadd.f32 %v2656, %v2905
    %2907 = vmatmul.f32.gmra.mxu0 %v2696
    %v2908 = vpop.f32.mrf.mxu0
    %v2909 = vadd.f32 %v2656, %v2908
    %2910 = vmatmul.f32.gmra.mxu0 %v2699
    %v2911 = vpop.f32.mrf.mxu0
    %v2912 = vadd.f32 %v2656, %v2911
    %2913 = vmatmul.f32.gmra.mxu0 %v2702
    %v2914 = vpop.f32.mrf.mxu0
    %v2915 = vadd.f32 %v2656, %v2914
    %2916 = vmatmul.f32.gmra.mxu0 %v2705
    %v2917 = vpop.f32.mrf.mxu0
    %v2918 = vadd.f32 %v2656, %v2917
    %2919 = vmatmul.f32.gmra.mxu0 %v2708
    %v2920 = vpop.f32.mrf.mxu0
    %v2921 = vadd.f32 %v2656, %v2920
    %2922 = vmatmul.f32.gmra.mxu0 %v2711
    %v2923 = vpop.f32.mrf.mxu0
    %v2924 = vadd.f32 %v2656, %v2923
    %2925 = vmatmul.f32.gmra.mxu0 %v2714
    %v2926 = vpop.f32.mrf.mxu0
    %v2927 = vadd.f32 %v2656, %v2926
    %2928 = vmatmul.f32.gmra.mxu0 %v2717
    %v2929 = vpop.f32.mrf.mxu0
    %v2930 = vadd.f32 %v2656, %v2929
    %2931 = vmatmul.f32.gmra.mxu0 %v2720
    %v2932 = vpop.f32.mrf.mxu0
    %v2933 = vadd.f32 %v2656, %v2932
    %2934 = vmatmul.f32.gmra.mxu0 %v2723
    %v2935 = vpop.f32.mrf.mxu0
    %v2936 = vadd.f32 %v2656, %v2935
    %2937 = vmatmul.f32.gmra.mxu0 %v2726
    %v2938 = vpop.f32.mrf.mxu0
    %v2939 = vadd.f32 %v2656, %v2938
    %2940 = vmatmul.f32.gmra.mxu0 %v2729
    %v2941 = vpop.f32.mrf.mxu0
    %v2942 = vadd.f32 %v2656, %v2941
    %2943 = vmatmul.f32.gmra.mxu0 %v2732
    %v2944 = vpop.f32.mrf.mxu0
    %v2945 = vadd.f32 %v2656, %v2944
    %2946 = vmatmul.f32.gmra.mxu0 %v2735
    %v2947 = vpop.f32.mrf.mxu0
    %v2948 = vadd.f32 %v2656, %v2947
    %2949 = vmatmul.f32.gmra.mxu0 %v2738
    %v2950 = vpop.f32.mrf.mxu0
    %v2951 = vadd.f32 %v2656, %v2950
    %2952 = vmatmul.f32.gmra.mxu0 %v2741
    %v2953 = vpop.f32.mrf.mxu0
    %v2954 = vadd.f32 %v2656, %v2953
    %2955 = vmatmul.f32.gmra.mxu0 %v2744
    %v2956 = vpop.f32.mrf.mxu0
    %v2957 = vadd.f32 %v2656, %v2956
    %2958 = vmatmul.f32.gmra.mxu0 %v2747
    %v2959 = vpop.f32.mrf.mxu0
    %v2960 = vadd.f32 %v2656, %v2959
    %2961 = vmatmul.f32.gmra.mxu0 %v2750
    %v2962 = vpop.f32.mrf.mxu0
    %v2963 = vadd.f32 %v2656, %v2962
    %2964 = vmatmul.f32.gmra.mxu0 %v2753
    %v2965 = vpop.f32.mrf.mxu0
    %v2966 = vadd.f32 %v2656, %v2965
    %2967 = vmatmul.f32.gmra.mxu0 %v2756
    %v2968 = vpop.f32.mrf.mxu0
    %v2969 = vadd.f32 %v2656, %v2968
    %2970 = vmatmul.f32.gmra.mxu0 %v2759
    %v2971 = vpop.f32.mrf.mxu0
    %v2972 = vadd.f32 %v2656, %v2971
    %2973 = vmatmul.f32.gmra.mxu0 %v2762
    %v2974 = vpop.f32.mrf.mxu0
    %v2975 = vadd.f32 %v2656, %v2974
    %2976 = vmatmul.f32.gmra.mxu0 %v2765
    %v2977 = vpop.f32.mrf.mxu0
    %v2978 = vadd.f32 %v2656, %v2977
    %2979 = vmatmul.f32.gmra.mxu0 %v2768
    %v2980 = vpop.f32.mrf.mxu0
    %v2981 = vadd.f32 %v2656, %v2980
    %2982 = vmatmul.f32.gmra.mxu0 %v2771
    %v2983 = vpop.f32.mrf.mxu0
    %v2984 = vadd.f32 %v2656, %v2983
    %2985 = vmatmul.f32.gmra.mxu0 %v2774
    %v2986 = vpop.f32.mrf.mxu0
    %v2987 = vadd.f32 %v2656, %v2986
    %2988 = vmatmul.f32.gmra.mxu0 %v2777
    %v2989 = vpop.f32.mrf.mxu0
    %v2990 = vadd.f32 %v2656, %v2989
    %2991 = vmatmul.f32.gmra.mxu0 %v2780
    %v2992 = vpop.f32.mrf.mxu0
    %v2993 = vadd.f32 %v2656, %v2992
    %2994 = vmatmul.f32.gmra.mxu0 %v2783
    %v2995 = vpop.f32.mrf.mxu0
    %v2996 = vadd.f32 %v2656, %v2995
    %2997 = vmatmul.f32.gmra.mxu0 %v2786
    %v2998 = vpop.f32.mrf.mxu0
    %v2999 = vadd.f32 %v2656, %v2998
    %3000 = vmatmul.f32.gmra.mxu0 %v2789
    %v3001 = vpop.f32.mrf.mxu0
    %v3002 = vadd.f32 %v2656, %v3001
    %3003 = vmatmul.f32.gmra.mxu0 %v2792
    %v3004 = vpop.f32.mrf.mxu0
    %v3005 = vadd.f32 %v2656, %v3004
    %3006 = vmatmul.f32.gmra.mxu0 %v2795
    %v3007 = vpop.f32.mrf.mxu0
    %v3008 = vadd.f32 %v2656, %v3007
    %3009 = vmatmul.f32.gmra.mxu0 %v2798
    %v3010 = vpop.f32.mrf.mxu0
    %v3011 = vadd.f32 %v2656, %v3010
    %3012 = vmatmul.f32.gmra.mxu0 %v2801
    %v3013 = vpop.f32.mrf.mxu0
    %v3014 = vadd.f32 %v2656, %v3013
    %3015 = vmatmul.f32.gmra.mxu0 %v2804
    %v3016 = vpop.f32.mrf.mxu0
    %v3017 = vadd.f32 %v2656, %v3016
    %3018 = vmatmul.f32.gmra.mxu0 %v2807
    %v3019 = vpop.f32.mrf.mxu0
    %v3020 = vadd.f32 %v2656, %v3019
    %3021 = vmatmul.f32.gmra.mxu0 %v2810
    %v3022 = vpop.f32.mrf.mxu0
    %v3023 = vadd.f32 %v2656, %v3022
    %3024 = vmatmul.f32.gmra.mxu0 %v2813
    %v3025 = vpop.f32.mrf.mxu0
    %v3026 = vadd.f32 %v2656, %v3025
    %3027 = vmatmul.f32.gmra.mxu0 %v2816
    %v3028 = vpop.f32.mrf.mxu0
    %v3029 = vadd.f32 %v2656, %v3028
    %3030 = vmatmul.f32.gmra.mxu0 %v2819
    %v3031 = vpop.f32.mrf.mxu0
    %v3032 = vadd.f32 %v2656, %v3031
    %3033 = vmatmul.f32.gmra.mxu0 %v2822
    %v3034 = vpop.f32.mrf.mxu0
    %v3035 = vadd.f32 %v2656, %v3034
    %3036 = vmatmul.f32.gmra.mxu0 %v2825
    %v3037 = vpop.f32.mrf.mxu0
    %v3038 = vadd.f32 %v2656, %v3037
    %3039 = vmatmul.f32.gmra.mxu0 %v2828
    %v3040 = vpop.f32.mrf.mxu0
    %v3041 = vadd.f32 %v2656, %v3040
    %3042 = vmatmul.f32.gmra.mxu0 %v2831
    %v3043 = vpop.f32.mrf.mxu0
    %v3044 = vadd.f32 %v2656, %v3043
    %3045 = vmatmul.f32.gmra.mxu0 %v2834
    %v3046 = vpop.f32.mrf.mxu0
    %v3047 = vadd.f32 %v2656, %v3046
    %3048 = vmatmul.f32.gmra.mxu0 %v2837
    %v3049 = vpop.f32.mrf.mxu0
    %v3050 = vadd.f32 %v2656, %v3049
    %3051 = vmatmul.f32.gmra.mxu0 %v2840
    %v3052 = vpop.f32.mrf.mxu0
    %v3053 = vadd.f32 %v2656, %v3052
    %3054 = vmatmul.f32.gmra.mxu0 %v2843
    %v3055 = vpop.f32.mrf.mxu0
    %v3056 = vadd.f32 %v2656, %v3055
    %3057 = vmatmul.f32.gmra.mxu0 %v2846
    %v3058 = vpop.f32.mrf.mxu0
    %v3059 = vadd.f32 %v2656, %v3058
    %3060 = vmatmul.f32.gmra.mxu0 %v2849
    %v3061 = vpop.f32.mrf.mxu0
    %v3062 = vadd.f32 %v2656, %v3061
    %3063 = vdwg.mxu0
    %3064 = vst [vmem:[#allocation2] sm:$0xff] %v2873
    %3065 = vst [vmem:[#allocation2 + $0x8] sm:$0xff] %v2876
    %3066 = vst [vmem:[#allocation2 + $0x10] sm:$0xff] %v2879
    %3067 = vst [vmem:[#allocation2 + $0x18] sm:$0xff] %v2882
    %3068 = vst [vmem:[#allocation2 + $0x20] sm:$0xff] %v2885
    %3069 = vst [vmem:[#allocation2 + $0x28] sm:$0xff] %v2888
    %3070 = vst [vmem:[#allocation2 + $0x30] sm:$0xff] %v2891
    %3071 = vst [vmem:[#allocation2 + $0x38] sm:$0xff] %v2894
    %3072 = vst [vmem:[#allocation2 + $0x40] sm:$0xff] %v2897
    %3073 = vst [vmem:[#allocation2 + $0x48] sm:$0xff] %v2900
    %3074 = vst [vmem:[#allocation2 + $0x50] sm:$0xff] %v2903
    %3075 = vst [vmem:[#allocation2 + $0x58] sm:$0xff] %v2906
    %3076 = vst [vmem:[#allocation2 + $0x60] sm:$0xff] %v2909
    %3077 = vst [vmem:[#allocation2 + $0x68] sm:$0xff] %v2912
    %3078 = vst [vmem:[#allocation2 + $0x70] sm:$0xff] %v2915
    %3079 = vst [vmem:[#allocation2 + $0x78] sm:$0xff] %v2918
    %3080 = vst [vmem:[#allocation2 + $0x80] sm:$0xff] %v2921
    %3081 = vst [vmem:[#allocation2 + $0x88] sm:$0xff] %v2924
    %3082 = vst [vmem:[#allocation2 + $0x90] sm:$0xff] %v2927
    %3083 = vst [vmem:[#allocation2 + $0x98] sm:$0xff] %v2930
    %3084 = vst [vmem:[#allocation2 + $0xa0] sm:$0xff] %v2933
    %3085 = vst [vmem:[#allocation2 + $0xa8] sm:$0xff] %v2936
    %3086 = vst [vmem:[#allocation2 + $0xb0] sm:$0xff] %v2939
    %3087 = vst [vmem:[#allocation2 + $0xb8] sm:$0xff] %v2942
    %3088 = vst [vmem:[#allocation2 + $0xc0] sm:$0xff] %v2945
    %3089 = vst [vmem:[#allocation2 + $0xc8] sm:$0xff] %v2948
    %3090 = vst [vmem:[#allocation2 + $0xd0] sm:$0xff] %v2951
    %3091 = vst [vmem:[#allocation2 + $0xd8] sm:$0xff] %v2954
    %3092 = vst [vmem:[#allocation2 + $0xe0] sm:$0xff] %v2957
    %3093 = vst [vmem:[#allocation2 + $0xe8] sm:$0xff] %v2960
    %3094 = vst [vmem:[#allocation2 + $0xf0] sm:$0xff] %v2963
    %3095 = vst [vmem:[#allocation2 + $0xf8] sm:$0xff] %v2966
    %3096 = vst [vmem:[#allocation2 + $0x100] sm:$0xff] %v2969
    %3097 = vst [vmem:[#allocation2 + $0x108] sm:$0xff] %v2972
    %3098 = vst [vmem:[#allocation2 + $0x110] sm:$0xff] %v2975
    %3099 = vst [vmem:[#allocation2 + $0x118] sm:$0xff] %v2978
    %3100 = vst [vmem:[#allocation2 + $0x120] sm:$0xff] %v2981
    %3101 = vst [vmem:[#allocation2 + $0x128] sm:$0xff] %v2984
    %3102 = vst [vmem:[#allocation2 + $0x130] sm:$0xff] %v2987
    %3103 = vst [vmem:[#allocation2 + $0x138] sm:$0xff] %v2990
    %3104 = vst [vmem:[#allocation2 + $0x140] sm:$0xff] %v2993
    %3105 = vst [vmem:[#allocation2 + $0x148] sm:$0xff] %v2996
    %3106 = vst [vmem:[#allocation2 + $0x150] sm:$0xff] %v2999
    %3107 = vst [vmem:[#allocation2 + $0x158] sm:$0xff] %v3002
    %3108 = vst [vmem:[#allocation2 + $0x160] sm:$0xff] %v3005
    %3109 = vst [vmem:[#allocation2 + $0x168] sm:$0xff] %v3008
    %3110 = vst [vmem:[#allocation2 + $0x170] sm:$0xff] %v3011
    %3111 = vst [vmem:[#allocation2 + $0x178] sm:$0xff] %v3014
    %3112 = vst [vmem:[#allocation2 + $0x180] sm:$0xff] %v3017
    %3113 = vst [vmem:[#allocation2 + $0x188] sm:$0xff] %v3020
    %3114 = vst [vmem:[#allocation2 + $0x190] sm:$0xff] %v3023
    %3115 = vst [vmem:[#allocation2 + $0x198] sm:$0xff] %v3026
    %3116 = vst [vmem:[#allocation2 + $0x1a0] sm:$0xff] %v3029
    %3117 = vst [vmem:[#allocation2 + $0x1a8] sm:$0xff] %v3032
    %3118 = vst [vmem:[#allocation2 + $0x1b0] sm:$0xff] %v3035
    %3119 = vst [vmem:[#allocation2 + $0x1b8] sm:$0xff] %v3038
    %3120 = vst [vmem:[#allocation2 + $0x1c0] sm:$0xff] %v3041
    %3121 = vst [vmem:[#allocation2 + $0x1c8] sm:$0xff] %v3044
    %3122 = vst [vmem:[#allocation2 + $0x1d0] sm:$0xff] %v3047
    %3123 = vst [vmem:[#allocation2 + $0x1d8] sm:$0xff] %v3050
    %3124 = vst [vmem:[#allocation2 + $0x1e0] sm:$0xff] %v3053
    %3125 = vst [vmem:[#allocation2 + $0x1e8] sm:$0xff] %v3056
    %3126 = vst [vmem:[#allocation2 + $0x1f0] sm:$0xff] %v3059
    %3127 = vst [vmem:[#allocation2 + $0x1f8] sm:$0xff] %v3062
    // Predicated region
    $region14: #{tpu_custom_call.1} parent=1 // pred_check
      _
    $region15: #{tpu_custom_call.1} parent=1 // pred_check_branch
      %3129 = sbr.rel (0) target = $region17
    $region16: #{tpu_custom_call.1} parent=1 // pred_region
      %3131 = vsyncadd [#allocation3], 0
      %s3132 = sshll.u32 [#allocation2], 4
      %s3133 = int_to_ptr.vmem [resolvable:$true] %s3132
      %s3134 = sshll.u32 %s3, 4
      %s3135 = int_to_ptr.hbm [resolvable:$true] %s3134
      %3140 = dma.vmem_to_hbm [thread:$0]  %s3133, 8192, %s3135, [#allocation3], 128, 128, 8
    $region17: #{tpu_custom_call.1} parent=1 // pred_fallthru
      _
    // Predicated region
    $region18: #{tpu_custom_call.1} parent=1 // pred_check
      _
    $region19: #{tpu_custom_call.1} parent=1 // pred_check_branch
      %3142 = sbr.rel (0) target = $region21
    $region20: #{tpu_custom_call.1} parent=1 // pred_region
      %3144 = dma.done [#allocation3], 8192
    $region21: #{tpu_custom_call.1} parent=1 // pred_fallthru
      _
    %3145 = vsyncpa [#allocation3], 1

</llo_original>
